<compile_context>
chip_gen: v5e
topology: v5e:2x2
jax: 0.10.0
libtpu: 0.0.40
codegen_flags: <defaults>
</compile_context>

<pallas_src>
import functools
import math

import jax
import jax.numpy as jnp
import numpy as np
from jax.experimental import pallas as pl
from jax.experimental.pallas import tpu as pltpu

INPUT_DIM = 6
HIDDEN = 8          # out_channels per head
HEADS = 2
EDGE_DIM = 4
NEG_INF = -1e30     # stands in for torch's -inf; gives identical softmax output

# lhs-transposed matmul dimension numbers: contract the leading (edge) axis.
TN_DIM_NUMBERS = (((0,), (0,)), ((), ()))


# ----------------------------- Pallas kernel ------------------------------ #
def transformer_net_kernel(
    x_ref, ea_ref, src_g_ref, dst_g_ref, mask3_ref,
    w4a_ref, b4a_ref, wea_ref,          # layer 1: packed q|k|v|skip + lin_edge
    w4b_ref, b4b_ref, web_ref,          # layer 2: packed q|k|v|skip + lin_edge
    w1m_ref, b1m_ref, w2m_ref, b2m_ref, # fused task|power|compute MLPs
    out_ref, *, heads, C):
  f32 = jnp.float32
  HC = heads * C

  def dot(a, b):
    return jnp.dot(a, b, preferred_element_type=f32)

  def dot_tn(a, b):   # a.T @ b  (contract leading axis of both)
    return jax.lax.dot_general(a, b, TN_DIM_NUMBERS, preferred_element_type=f32)

  src_g = src_g_ref[...]          # [E, N] one-hot of edge source
  dst_g = dst_g_ref[...]          # [E, N] one-hot of edge target
  ea = ea_ref[...]                # [E, D]

  def seg_softmax(z, g):
    """Column-wise per-segment softmax of z [E,K], segments given by one-hot g [E,N].

    Uses a true per-segment max (matches PyG softmax) and computes both the max
    and the denominator with masked VPU/XLU reductions -- zero extra MXU ops.
    """
    cols = []
    for c in range(z.shape[-1]):
      zc = z[:, c:c + 1]                                                    # [E,1]
      seg_max = jnp.max(jnp.where(g > 0.5, zc, NEG_INF), axis=0,
                        keepdims=True)                                      # [1,N]
      m_e = jnp.max(jnp.where(g > 0.5, seg_max, NEG_INF), axis=1,
                    keepdims=True)                                          # [E,1]
      pz = jnp.exp(zc - m_e)                                                # [E,1]
      seg_sum = jnp.sum(jnp.where(g > 0.5, pz, 0.0), axis=0, keepdims=True) # [1,N]
      den = jnp.sum(jnp.where(g > 0.5, seg_sum, 0.0), axis=1,
                    keepdims=True)                                          # [E,1]
      cols.append(pz / den)
    return jnp.concatenate(cols, axis=-1)

  def conv_messages(xin, w4_ref, b4_ref, we_ref):
    """Shared TransformerConv core: returns (out_msg [E,HC], skip [N,HC])."""
    z = dot(xin, w4_ref[...]) + b4_ref[...]          # [N, 4*HC]: q|k|v|skip fused
    q = z[:, 0:HC]                                   # wq already scaled by 1/sqrt(C)
    k = z[:, HC:2 * HC]
    v = z[:, 2 * HC:3 * HC]
    skip = z[:, 3 * HC:4 * HC]
    ep = dot(ea, we_ref[...])                        # [E, HC]  lin_edge (no bias)
    q_i = dot(dst_g, q)                              # gather at target node
    k_j = dot(src_g, k) + ep                         # gather at source + edge proj
    v_j = dot(src_g, v)
    qk = q_i * k_j
    # per-head dot products -> [E, H]  (lane slice + lane-reduce, no MXU)
    alpha = jnp.concatenate(
        [jnp.sum(qk[:, h * C:(h + 1) * C], axis=1, keepdims=True)
         for h in range(heads)], axis=1)
    a_sm = seg_softmax(alpha, dst_g)                 # softmax over dst segments
    vep = v_j + ep
    out_msg = jnp.concatenate(
        [vep[:, h * C:(h + 1) * C] * a_sm[:, h:h + 1] for h in range(heads)],
        axis=1)                                      # [E, HC]
    return out_msg, skip

  # ---- layer 1: only its (relu'd) node features are needed downstream ----
  msg1, skip1 = conv_messages(x_ref[...], w4a_ref, b4a_ref, wea_ref)
  node1 = dot_tn(dst_g, msg1) + skip1                # aggr='add' over dst + lin_skip
  node1 = jnp.maximum(node1, 0.0)                    # TransformerNet's F.relu

  # ---- layer 2: only its edge messages feed the allocation heads ----------
  msg2, _ = conv_messages(node1, w4b_ref, b4b_ref, web_ref)

  # fused task / power / compute MLPs: [E,HC] -> [E,3C] -> [E,3]
  h1 = jnp.maximum(dot(msg2, w1m_ref[...]) + b1m_ref[...], 0.0)
  z3 = dot(h1, w2m_ref[...]) + b2m_ref[...]
  z3 = jnp.where(z3 >= 0.0, z3, 0.01 * z3)           # LeakyReLU
  z3 = z3 + mask3_ref[...]                           # -1e30 on self-loops, power col only

  # cols 0 (task) & 1 (power): softmax grouped by edge source; col 2 (compute): by target
  sm_src = seg_softmax(z3[:, 0:2], src_g)            # [E, 2]
  sm_dst = seg_softmax(z3[:, 2:3], dst_g)            # [E, 1]
  out_ref[...] = jnp.concatenate([sm_src, sm_dst], axis=1)


# ------------------------------ JAX wrapper -------------------------------- #
def _full_spec(shape):
  nd = len(shape)
  return pl.BlockSpec(shape, lambda i, nd=nd: (0,) * nd)


def _pack_conv_params(p, C):
  s = 1.0 / math.sqrt(C)                    # fold attention scale into wq/bq
  w4 = jnp.concatenate([p['wq'] * s, p['wk'], p['wv'], p['ws']], axis=1)
  b4 = jnp.concatenate([p['bq'] * s, p['bk'], p['bv'], p['bs']], axis=1)
  return w4, b4, p['we']


def _pack_mlp_params(p, C):
  w1m = jnp.concatenate([p['w1t'], p['w1p'], p['w1c']], axis=1)     # [HC, 3C]
  b1m = jnp.concatenate([p['b1t'], p['b1p'], p['b1c']], axis=1)     # [1, 3C]
  w2m = jnp.zeros((3 * C, 3), jnp.float32)                          # block-diagonal
  w2m = w2m.at[0:C, 0:1].set(p['w2t'])
  w2m = w2m.at[C:2 * C, 1:2].set(p['w2p'])
  w2m = w2m.at[2 * C:3 * C, 2:3].set(p['w2c'])
  b2m = jnp.concatenate([p['b2t'], p['b2p'], p['b2c']], axis=1)     # [1, 3]
  return w1m, b1m, w2m, b2m


@jax.jit
def transformer_net(x, edge_index, edge_attr, params1, params2):
  N, E = x.shape[0], edge_index.shape[1]
  src, dst = edge_index[0], edge_index[1]

  # glue: dense one-hot gather matrices (transposes are NOT materialized; only
  # 2 x [E,N] f32 instead of 4 -- halves the O(E*N) VMEM/DMA footprint).
  src_g = jax.nn.one_hot(src, N, dtype=jnp.float32)     # [E, N]
  dst_g = jax.nn.one_hot(dst, N, dtype=jnp.float32)     # [E, N]
  self_loop = (src == dst)[:, None]                     # [E, 1]
  mask3 = jnp.where(self_loop & (jnp.arange(3)[None, :] == 1),
                    NEG_INF, 0.0).astype(jnp.float32)   # [E, 3] (power column only)

  w4a, b4a, wea = _pack_conv_params(params1, HIDDEN)
  w4b, b4b, web = _pack_conv_params(params2, HIDDEN)
  w1m, b1m, w2m, b2m = _pack_mlp_params(params2, HIDDEN)

  operands = [x, edge_attr, src_g, dst_g, mask3,
              w4a, b4a, wea, w4b, b4b, web, w1m, b1m, w2m, b2m]

  kernel = functools.partial(transformer_net_kernel, heads=HEADS, C=HIDDEN)
  out = pl.pallas_call(
      kernel,
      out_shape=jax.ShapeDtypeStruct((E, 3), jnp.float32),
      grid=(1,),
      in_specs=[_full_spec(a.shape) for a in operands],
      out_specs=_full_spec((E, 3)),
      compiler_params=pltpu.CompilerParams(dimension_semantics=("arbitrary",)),
  )(*operands)
  # split the lane-packed [E,3] result: task, power, compute
  return out[:, 0:1], out[:, 1:2], out[:, 2:3]


# --------------------------- pure-JAX reference ---------------------------- #
def _pyg_softmax(z, idx, n):
  m = jax.ops.segment_max(z, idx, num_segments=n)
  p = jnp.exp(z - m[idx])
  s = jax.ops.segment_sum(p, idx, num_segments=n)
  return p / s[idx]


def conv_ref(x, edge_index, edge_attr, p, heads, C):
  N, E = x.shape[0], edge_index.shape[1]
  HC = heads * C
  src, dst = edge_index[0], edge_index[1]
  hi = jax.lax.Precision.HIGHEST
  mm = lambda a, b: jnp.matmul(a, b, precision=hi)
  q = (mm(x, p['wq']) + p['bq']).reshape(N, heads, C)
  k = (mm(x, p['wk']) + p['bk']).reshape(N, heads, C)
  v = (mm(x, p['wv']) + p['bv']).reshape(N, heads, C)
  ep = mm(edge_attr, p['we']).reshape(E, heads, C)
  q_i, k_j, v_j = q[dst], k[src] + ep, v[src]
  alpha = (q_i * k_j).sum(-1) / math.sqrt(C)
  alpha = _pyg_softmax(alpha, dst, N)
  out_msg = (v_j + ep) * alpha[..., None]
  node = jax.ops.segment_sum(out_msg, dst, num_segments=N).reshape(N, HC)
  node = jax.nn.relu(node + mm(x, p['ws']) + p['bs'])
  outm = out_msg.reshape(E, HC)
  mask = jnp.where(src == dst, NEG_INF, 0.0)[:, None]

  def mlp(w1, b1, w2, b2):
    h = jax.nn.relu(mm(outm, w1) + b1)
    return jax.nn.leaky_relu(mm(h, w2) + b2, negative_slope=0.01)

  task = _pyg_softmax(mlp(p['w1t'], p['b1t'], p['w2t'], p['b2t']), src, N)
  power = _pyg_softmax(mlp(p['w1p'], p['b1p'], p['w2p'], p['b2p']) + mask, src, N)
  comp = _pyg_softmax(mlp(p['w1c'], p['b1c'], p['w2c'], p['b2c']), dst, N)
  return node, task, power, comp


def net_ref(x, edge_index, edge_attr, p1, p2):
  n1, _, _, _ = conv_ref(x, edge_index, edge_attr, p1, HEADS, HIDDEN)
  _, t, pw, c = conv_ref(n1, edge_index, edge_attr, p2, HEADS, HIDDEN)
  return t, pw, c


# ------------------------------ param init --------------------------------- #
def make_conv_params(key, in_dim, out_channels, heads, edge_dim):
  HC = heads * out_channels
  ks = jax.random.split(key, 21)
  w = lambda k, shape, s=0.2: s * jax.random.normal(k, shape, dtype=jnp.float32)
  return dict(
      wq=w(ks[0], (in_dim, HC)), bq=w(ks[1], (1, HC), 0.05),
      wk=w(ks[2], (in_dim, HC)), bk=w(ks[3], (1, HC), 0.05),
      wv=w(ks[4], (in_dim, HC)), bv=w(ks[5], (1, HC), 0.05),
      we=w(ks[6], (edge_dim, HC)),
      ws=w(ks[7], (in_dim, HC)), bs=w(ks[8], (1, HC), 0.05),
      w1t=w(ks[9], (HC, out_channels)), b1t=w(ks[10], (1, out_channels), 0.05),
      w2t=w(ks[11], (out_channels, 1)), b2t=w(ks[12], (1, 1), 0.05),
      w1p=w(ks[13], (HC, out_channels)), b1p=w(ks[14], (1, out_channels), 0.05),
      w2p=w(ks[15], (out_channels, 1)), b2p=w(ks[16], (1, 1), 0.05),
      w1c=w(ks[17], (HC, out_channels)), b1c=w(ks[18], (1, out_channels), 0.05),
      w2c=w(ks[19], (out_channels, 1)), b2c=w(ks[20], (1, 1), 0.05),
  )


# --------------------------------- main ------------------------------------ #
if __name__ == "__main__":
  key = jax.random.PRNGKey(0)
  k_x, k_ea, k_p1, k_p2 = jax.random.split(key, 4)

  N = 8                                   # nodes
  # ring edges + self loops -> E = 16
  src_list, dst_list = [], []
  for i in range(N):
    src_list += [i, i]
    dst_list += [(i + 1) % N, i]
  edge_index = jnp.array([src_list, dst_list], dtype=jnp.int32)   # [2, 16]
  E = edge_index.shape[1]

  x = jax.random.normal(k_x, (N, INPUT_DIM), dtype=jnp.float32)
  edge_attr = jax.random.normal(k_ea, (E, EDGE_DIM), dtype=jnp.float32)

  params1 = make_conv_params(k_p1, INPUT_DIM, HIDDEN, HEADS, EDGE_DIM)
  params2 = make_conv_params(k_p2, HIDDEN * HEADS, HIDDEN, HEADS, EDGE_DIM)

  out = transformer_net(x, edge_index, edge_attr, params1, params2)
  out = jax.block_until_ready(out)

  ref = net_ref(x, edge_index, edge_attr, params1, params2)
  for o, r in zip(out, ref):
    np.testing.assert_allclose(np.asarray(o), np.asarray(r), rtol=2e-2, atol=2e-3)

  print("KERNEL_OK")
</pallas_src>

<mosaic_0001>
module attributes {stable_mosaic.version = 11 : i64} {
  func.func @transformer_net_kernel(%arg0: i32, %arg1: memref<8x6xf32, #tpu.memory_space<vmem>>, %arg2: memref<16x4xf32, #tpu.memory_space<vmem>>, %arg3: memref<16x8xf32, #tpu.memory_space<vmem>>, %arg4: memref<16x8xf32, #tpu.memory_space<vmem>>, %arg5: memref<16x3xf32, #tpu.memory_space<vmem>>, %arg6: memref<6x64xf32, #tpu.memory_space<vmem>>, %arg7: memref<1x64xf32, #tpu.memory_space<vmem>>, %arg8: memref<4x16xf32, #tpu.memory_space<vmem>>, %arg9: memref<16x64xf32, #tpu.memory_space<vmem>>, %arg10: memref<1x64xf32, #tpu.memory_space<vmem>>, %arg11: memref<4x16xf32, #tpu.memory_space<vmem>>, %arg12: memref<16x24xf32, #tpu.memory_space<vmem>>, %arg13: memref<1x24xf32, #tpu.memory_space<vmem>>, %arg14: memref<24x3xf32, #tpu.memory_space<vmem>>, %arg15: memref<1x3xf32, #tpu.memory_space<vmem>>, %arg16: memref<16x3xf32, #tpu.memory_space<vmem>>) attributes {dimension_semantics = [#tpu.dimension_semantics<arbitrary>], iteration_bounds = array<i64: 1>, scalar_prefetch = 0 : i64, scratch_operands = 0 : i64, tpu.core_type = #tpu.core_type<tc>, window_params = [{pipeline_mode = #tpu.pipeline_mode<synchronous>, transform_indices = @transform_0, window_bounds = array<i64: 8, 6>}, {pipeline_mode = #tpu.pipeline_mode<synchronous>, transform_indices = @transform_1, window_bounds = array<i64: 16, 4>}, {pipeline_mode = #tpu.pipeline_mode<synchronous>, transform_indices = @transform_2, window_bounds = array<i64: 16, 8>}, {pipeline_mode = #tpu.pipeline_mode<synchronous>, transform_indices = @transform_3, window_bounds = array<i64: 16, 8>}, {pipeline_mode = #tpu.pipeline_mode<synchronous>, transform_indices = @transform_4, window_bounds = array<i64: 16, 3>}, {pipeline_mode = #tpu.pipeline_mode<synchronous>, transform_indices = @transform_5, window_bounds = array<i64: 6, 64>}, {pipeline_mode = #tpu.pipeline_mode<synchronous>, transform_indices = @transform_6, window_bounds = array<i64: 1, 64>}, {pipeline_mode = #tpu.pipeline_mode<synchronous>, transform_indices = @transform_7, window_bounds = array<i64: 4, 16>}, {pipeline_mode = #tpu.pipeline_mode<synchronous>, transform_indices = @transform_8, window_bounds = array<i64: 16, 64>}, {pipeline_mode = #tpu.pipeline_mode<synchronous>, transform_indices = @transform_9, window_bounds = array<i64: 1, 64>}, {pipeline_mode = #tpu.pipeline_mode<synchronous>, transform_indices = @transform_10, window_bounds = array<i64: 4, 16>}, {pipeline_mode = #tpu.pipeline_mode<synchronous>, transform_indices = @transform_11, window_bounds = array<i64: 16, 24>}, {pipeline_mode = #tpu.pipeline_mode<synchronous>, transform_indices = @transform_12, window_bounds = array<i64: 1, 24>}, {pipeline_mode = #tpu.pipeline_mode<synchronous>, transform_indices = @transform_13, window_bounds = array<i64: 24, 3>}, {pipeline_mode = #tpu.pipeline_mode<synchronous>, transform_indices = @transform_14, window_bounds = array<i64: 1, 3>}, {pipeline_mode = #tpu.pipeline_mode<synchronous>, transform_indices = @transform_15, window_bounds = array<i64: 16, 3>}]} {
    %c0 = arith.constant 0 : index
    %c0_0 = arith.constant 0 : index
    %0 = vector.load %arg3[%c0, %c0_0] : memref<16x8xf32, #tpu.memory_space<vmem>>, vector<16x8xf32>
    %c0_1 = arith.constant 0 : index
    %c0_2 = arith.constant 0 : index
    %1 = vector.load %arg4[%c0_1, %c0_2] : memref<16x8xf32, #tpu.memory_space<vmem>>, vector<16x8xf32>
    %c0_3 = arith.constant 0 : index
    %c0_4 = arith.constant 0 : index
    %2 = vector.load %arg2[%c0_3, %c0_4] : memref<16x4xf32, #tpu.memory_space<vmem>>, vector<16x4xf32>
    %c0_5 = arith.constant 0 : index
    %c0_6 = arith.constant 0 : index
    %3 = vector.load %arg1[%c0_5, %c0_6] : memref<8x6xf32, #tpu.memory_space<vmem>>, vector<8x6xf32>
    %c0_7 = arith.constant 0 : index
    %c0_8 = arith.constant 0 : index
    %4 = vector.load %arg6[%c0_7, %c0_8] : memref<6x64xf32, #tpu.memory_space<vmem>>, vector<6x64xf32>
    %cst = arith.constant dense<0.000000e+00> : vector<8x64xf32>
    %5 = tpu.matmul %3, %4, %cst {dimension_numbers = #tpu.dot_dimension_numbers<[1], [0], [0], [1], [0, 0, 1, 1], [], []>} : vector<8x6xf32>, vector<6x64xf32>, vector<8x64xf32> -> vector<8x64xf32>
    %c0_9 = arith.constant 0 : index
    %c0_10 = arith.constant 0 : index
    %6 = vector.load %arg7[%c0_9, %c0_10] : memref<1x64xf32, #tpu.memory_space<vmem>>, vector<1x64xf32>
    %7 = vector.broadcast %6 : vector<1x64xf32> to vector<8x64xf32>
    %8 = arith.addf %5, %7 : vector<8x64xf32>
    %9 = vector.extract_strided_slice %8 {offsets = [0, 0], sizes = [8, 16], strides = [1, 1]} : vector<8x64xf32> to vector<8x16xf32>
    %10 = vector.extract_strided_slice %8 {offsets = [0, 16], sizes = [8, 16], strides = [1, 1]} : vector<8x64xf32> to vector<8x16xf32>
    %11 = vector.extract_strided_slice %8 {offsets = [0, 32], sizes = [8, 16], strides = [1, 1]} : vector<8x64xf32> to vector<8x16xf32>
    %12 = vector.extract_strided_slice %8 {offsets = [0, 48], sizes = [8, 16], strides = [1, 1]} : vector<8x64xf32> to vector<8x16xf32>
    %c0_11 = arith.constant 0 : index
    %c0_12 = arith.constant 0 : index
    %13 = vector.load %arg8[%c0_11, %c0_12] : memref<4x16xf32, #tpu.memory_space<vmem>>, vector<4x16xf32>
    %cst_13 = arith.constant dense<0.000000e+00> : vector<16x16xf32>
    %14 = tpu.matmul %2, %13, %cst_13 {dimension_numbers = #tpu.dot_dimension_numbers<[1], [0], [0], [1], [0, 0, 1, 1], [], []>} : vector<16x4xf32>, vector<4x16xf32>, vector<16x16xf32> -> vector<16x16xf32>
    %cst_14 = arith.constant dense<0.000000e+00> : vector<16x16xf32>
    %15 = tpu.matmul %1, %9, %cst_14 {dimension_numbers = #tpu.dot_dimension_numbers<[1], [0], [0], [1], [0, 0, 1, 1], [], []>} : vector<16x8xf32>, vector<8x16xf32>, vector<16x16xf32> -> vector<16x16xf32>
    %cst_15 = arith.constant dense<0.000000e+00> : vector<16x16xf32>
    %16 = tpu.matmul %0, %10, %cst_15 {dimension_numbers = #tpu.dot_dimension_numbers<[1], [0], [0], [1], [0, 0, 1, 1], [], []>} : vector<16x8xf32>, vector<8x16xf32>, vector<16x16xf32> -> vector<16x16xf32>
    %17 = arith.addf %16, %14 : vector<16x16xf32>
    %cst_16 = arith.constant dense<0.000000e+00> : vector<16x16xf32>
    %18 = tpu.matmul %0, %11, %cst_16 {dimension_numbers = #tpu.dot_dimension_numbers<[1], [0], [0], [1], [0, 0, 1, 1], [], []>} : vector<16x8xf32>, vector<8x16xf32>, vector<16x16xf32> -> vector<16x16xf32>
    %19 = arith.mulf %15, %17 : vector<16x16xf32>
    %20 = vector.extract_strided_slice %19 {offsets = [0, 0], sizes = [16, 8], strides = [1, 1]} : vector<16x16xf32> to vector<16x8xf32>
    %cst_17 = arith.constant dense<0.000000e+00> : vector<16xf32>
    %21 = vector.multi_reduction <add>, %20, %cst_17 [1] : vector<16x8xf32> to vector<16xf32>
    %22 = vector.shape_cast %21 : vector<16xf32> to vector<16x1xf32>
    %23 = vector.extract_strided_slice %19 {offsets = [0, 8], sizes = [16, 8], strides = [1, 1]} : vector<16x16xf32> to vector<16x8xf32>
    %cst_18 = arith.constant dense<0.000000e+00> : vector<16xf32>
    %24 = vector.multi_reduction <add>, %23, %cst_18 [1] : vector<16x8xf32> to vector<16xf32>
    %25 = vector.shape_cast %24 : vector<16xf32> to vector<16x1xf32>
    %26 = tpu.concatenate %22, %25 in 1 : vector<16x1xf32>, vector<16x1xf32> -> vector<16x2xf32>
    %27 = vector.extract_strided_slice %26 {offsets = [0, 0], sizes = [16, 1], strides = [1, 1]} : vector<16x2xf32> to vector<16x1xf32>
    %cst_19 = arith.constant 5.000000e-01 : f32
    %28 = vector.broadcast %cst_19 : f32 to vector<16x8xf32>
    %29 = arith.cmpf ogt, %1, %28 : vector<16x8xf32>
    %cst_20 = arith.constant -1.000000e+30 : f32
    %30 = vector.shape_cast %27 : vector<16x1xf32> to vector<16x1xf32>
    %31 = vector.broadcast %30 : vector<16x1xf32> to vector<16x8xf32>
    %32 = vector.broadcast %cst_20 : f32 to vector<16x8xf32>
    %33 = arith.select %29, %31, %32 : vector<16x8xi1>, vector<16x8xf32>
    %cst_21 = arith.constant dense<0xFF800000> : vector<8xf32>
    %34 = vector.multi_reduction <maximumf>, %33, %cst_21 [0] : vector<16x8xf32> to vector<8xf32>
    %35 = vector.shape_cast %34 : vector<8xf32> to vector<1x8xf32>
    %cst_22 = arith.constant 5.000000e-01 : f32
    %36 = vector.broadcast %cst_22 : f32 to vector<16x8xf32>
    %37 = arith.cmpf ogt, %1, %36 : vector<16x8xf32>
    %cst_23 = arith.constant -1.000000e+30 : f32
    %38 = vector.shape_cast %35 : vector<1x8xf32> to vector<1x8xf32>
    %39 = vector.broadcast %38 : vector<1x8xf32> to vector<16x8xf32>
    %40 = vector.broadcast %cst_23 : f32 to vector<16x8xf32>
    %41 = arith.select %37, %39, %40 : vector<16x8xi1>, vector<16x8xf32>
    %cst_24 = arith.constant dense<0xFF800000> : vector<16xf32>
    %42 = vector.multi_reduction <maximumf>, %41, %cst_24 [1] : vector<16x8xf32> to vector<16xf32>
    %43 = vector.shape_cast %42 : vector<16xf32> to vector<16x1xf32>
    %44 = arith.subf %27, %43 : vector<16x1xf32>
    %45 = math.exp %44 : vector<16x1xf32>
    %cst_25 = arith.constant 5.000000e-01 : f32
    %46 = vector.broadcast %cst_25 : f32 to vector<16x8xf32>
    %47 = arith.cmpf ogt, %1, %46 : vector<16x8xf32>
    %cst_26 = arith.constant 0.000000e+00 : f32
    %48 = vector.shape_cast %45 : vector<16x1xf32> to vector<16x1xf32>
    %49 = vector.broadcast %48 : vector<16x1xf32> to vector<16x8xf32>
    %50 = vector.broadcast %cst_26 : f32 to vector<16x8xf32>
    %51 = arith.select %47, %49, %50 : vector<16x8xi1>, vector<16x8xf32>
    %cst_27 = arith.constant dense<0.000000e+00> : vector<8xf32>
    %52 = vector.multi_reduction <add>, %51, %cst_27 [0] : vector<16x8xf32> to vector<8xf32>
    %53 = vector.shape_cast %52 : vector<8xf32> to vector<1x8xf32>
    %cst_28 = arith.constant 5.000000e-01 : f32
    %54 = vector.broadcast %cst_28 : f32 to vector<16x8xf32>
    %55 = arith.cmpf ogt, %1, %54 : vector<16x8xf32>
    %cst_29 = arith.constant 0.000000e+00 : f32
    %56 = vector.shape_cast %53 : vector<1x8xf32> to vector<1x8xf32>
    %57 = vector.broadcast %56 : vector<1x8xf32> to vector<16x8xf32>
    %58 = vector.broadcast %cst_29 : f32 to vector<16x8xf32>
    %59 = arith.select %55, %57, %58 : vector<16x8xi1>, vector<16x8xf32>
    %cst_30 = arith.constant dense<0.000000e+00> : vector<16xf32>
    %60 = vector.multi_reduction <add>, %59, %cst_30 [1] : vector<16x8xf32> to vector<16xf32>
    %61 = vector.shape_cast %60 : vector<16xf32> to vector<16x1xf32>
    %62 = arith.divf %45, %61 : vector<16x1xf32>
    %63 = vector.extract_strided_slice %26 {offsets = [0, 1], sizes = [16, 1], strides = [1, 1]} : vector<16x2xf32> to vector<16x1xf32>
    %cst_31 = arith.constant 5.000000e-01 : f32
    %64 = vector.broadcast %cst_31 : f32 to vector<16x8xf32>
    %65 = arith.cmpf ogt, %1, %64 : vector<16x8xf32>
    %cst_32 = arith.constant -1.000000e+30 : f32
    %66 = vector.shape_cast %63 : vector<16x1xf32> to vector<16x1xf32>
    %67 = vector.broadcast %66 : vector<16x1xf32> to vector<16x8xf32>
    %68 = vector.broadcast %cst_32 : f32 to vector<16x8xf32>
    %69 = arith.select %65, %67, %68 : vector<16x8xi1>, vector<16x8xf32>
    %cst_33 = arith.constant dense<0xFF800000> : vector<8xf32>
    %70 = vector.multi_reduction <maximumf>, %69, %cst_33 [0] : vector<16x8xf32> to vector<8xf32>
    %71 = vector.shape_cast %70 : vector<8xf32> to vector<1x8xf32>
    %cst_34 = arith.constant 5.000000e-01 : f32
    %72 = vector.broadcast %cst_34 : f32 to vector<16x8xf32>
    %73 = arith.cmpf ogt, %1, %72 : vector<16x8xf32>
    %cst_35 = arith.constant -1.000000e+30 : f32
    %74 = vector.shape_cast %71 : vector<1x8xf32> to vector<1x8xf32>
    %75 = vector.broadcast %74 : vector<1x8xf32> to vector<16x8xf32>
    %76 = vector.broadcast %cst_35 : f32 to vector<16x8xf32>
    %77 = arith.select %73, %75, %76 : vector<16x8xi1>, vector<16x8xf32>
    %cst_36 = arith.constant dense<0xFF800000> : vector<16xf32>
    %78 = vector.multi_reduction <maximumf>, %77, %cst_36 [1] : vector<16x8xf32> to vector<16xf32>
    %79 = vector.shape_cast %78 : vector<16xf32> to vector<16x1xf32>
    %80 = arith.subf %63, %79 : vector<16x1xf32>
    %81 = math.exp %80 : vector<16x1xf32>
    %cst_37 = arith.constant 5.000000e-01 : f32
    %82 = vector.broadcast %cst_37 : f32 to vector<16x8xf32>
    %83 = arith.cmpf ogt, %1, %82 : vector<16x8xf32>
    %cst_38 = arith.constant 0.000000e+00 : f32
    %84 = vector.shape_cast %81 : vector<16x1xf32> to vector<16x1xf32>
    %85 = vector.broadcast %84 : vector<16x1xf32> to vector<16x8xf32>
    %86 = vector.broadcast %cst_38 : f32 to vector<16x8xf32>
    %87 = arith.select %83, %85, %86 : vector<16x8xi1>, vector<16x8xf32>
    %cst_39 = arith.constant dense<0.000000e+00> : vector<8xf32>
    %88 = vector.multi_reduction <add>, %87, %cst_39 [0] : vector<16x8xf32> to vector<8xf32>
    %89 = vector.shape_cast %88 : vector<8xf32> to vector<1x8xf32>
    %cst_40 = arith.constant 5.000000e-01 : f32
    %90 = vector.broadcast %cst_40 : f32 to vector<16x8xf32>
    %91 = arith.cmpf ogt, %1, %90 : vector<16x8xf32>
    %cst_41 = arith.constant 0.000000e+00 : f32
    %92 = vector.shape_cast %89 : vector<1x8xf32> to vector<1x8xf32>
    %93 = vector.broadcast %92 : vector<1x8xf32> to vector<16x8xf32>
    %94 = vector.broadcast %cst_41 : f32 to vector<16x8xf32>
    %95 = arith.select %91, %93, %94 : vector<16x8xi1>, vector<16x8xf32>
    %cst_42 = arith.constant dense<0.000000e+00> : vector<16xf32>
    %96 = vector.multi_reduction <add>, %95, %cst_42 [1] : vector<16x8xf32> to vector<16xf32>
    %97 = vector.shape_cast %96 : vector<16xf32> to vector<16x1xf32>
    %98 = arith.divf %81, %97 : vector<16x1xf32>
    %99 = tpu.concatenate %62, %98 in 1 : vector<16x1xf32>, vector<16x1xf32> -> vector<16x2xf32>
    %100 = arith.addf %18, %14 : vector<16x16xf32>
    %101 = vector.extract_strided_slice %100 {offsets = [0, 0], sizes = [16, 8], strides = [1, 1]} : vector<16x16xf32> to vector<16x8xf32>
    %102 = vector.extract_strided_slice %99 {offsets = [0, 0], sizes = [16, 1], strides = [1, 1]} : vector<16x2xf32> to vector<16x1xf32>
    %103 = vector.broadcast %102 : vector<16x1xf32> to vector<16x8xf32>
    %104 = arith.mulf %101, %103 : vector<16x8xf32>
    %105 = vector.extract_strided_slice %100 {offsets = [0, 8], sizes = [16, 8], strides = [1, 1]} : vector<16x16xf32> to vector<16x8xf32>
    %106 = vector.extract_strided_slice %99 {offsets = [0, 1], sizes = [16, 1], strides = [1, 1]} : vector<16x2xf32> to vector<16x1xf32>
    %107 = vector.broadcast %106 : vector<16x1xf32> to vector<16x8xf32>
    %108 = arith.mulf %105, %107 : vector<16x8xf32>
    %109 = tpu.concatenate %104, %108 in 1 : vector<16x8xf32>, vector<16x8xf32> -> vector<16x16xf32>
    %cst_43 = arith.constant dense<0.000000e+00> : vector<8x16xf32>
    %110 = tpu.matmul %1, %109, %cst_43 {dimension_numbers = #tpu.dot_dimension_numbers<[0], [0], [1], [1], [0, 1, 1, 1], [], []>} : vector<16x8xf32>, vector<16x16xf32>, vector<8x16xf32> -> vector<8x16xf32>
    %111 = arith.addf %110, %12 : vector<8x16xf32>
    %cst_44 = arith.constant 0.000000e+00 : f32
    %112 = vector.broadcast %cst_44 : f32 to vector<8x16xf32>
    %113 = arith.maximumf %111, %112 : vector<8x16xf32>
    %c0_45 = arith.constant 0 : index
    %c0_46 = arith.constant 0 : index
    %114 = vector.load %arg9[%c0_45, %c0_46] : memref<16x64xf32, #tpu.memory_space<vmem>>, vector<16x64xf32>
    %cst_47 = arith.constant dense<0.000000e+00> : vector<8x64xf32>
    %115 = tpu.matmul %113, %114, %cst_47 {dimension_numbers = #tpu.dot_dimension_numbers<[1], [0], [0], [1], [0, 0, 1, 1], [], []>} : vector<8x16xf32>, vector<16x64xf32>, vector<8x64xf32> -> vector<8x64xf32>
    %c0_48 = arith.constant 0 : index
    %c0_49 = arith.constant 0 : index
    %116 = vector.load %arg10[%c0_48, %c0_49] : memref<1x64xf32, #tpu.memory_space<vmem>>, vector<1x64xf32>
    %117 = vector.broadcast %116 : vector<1x64xf32> to vector<8x64xf32>
    %118 = arith.addf %115, %117 : vector<8x64xf32>
    %119 = vector.extract_strided_slice %118 {offsets = [0, 0], sizes = [8, 16], strides = [1, 1]} : vector<8x64xf32> to vector<8x16xf32>
    %120 = vector.extract_strided_slice %118 {offsets = [0, 16], sizes = [8, 16], strides = [1, 1]} : vector<8x64xf32> to vector<8x16xf32>
    %121 = vector.extract_strided_slice %118 {offsets = [0, 32], sizes = [8, 16], strides = [1, 1]} : vector<8x64xf32> to vector<8x16xf32>
    %c0_50 = arith.constant 0 : index
    %c0_51 = arith.constant 0 : index
    %122 = vector.load %arg11[%c0_50, %c0_51] : memref<4x16xf32, #tpu.memory_space<vmem>>, vector<4x16xf32>
    %cst_52 = arith.constant dense<0.000000e+00> : vector<16x16xf32>
    %123 = tpu.matmul %2, %122, %cst_52 {dimension_numbers = #tpu.dot_dimension_numbers<[1], [0], [0], [1], [0, 0, 1, 1], [], []>} : vector<16x4xf32>, vector<4x16xf32>, vector<16x16xf32> -> vector<16x16xf32>
    %cst_53 = arith.constant dense<0.000000e+00> : vector<16x16xf32>
    %124 = tpu.matmul %1, %119, %cst_53 {dimension_numbers = #tpu.dot_dimension_numbers<[1], [0], [0], [1], [0, 0, 1, 1], [], []>} : vector<16x8xf32>, vector<8x16xf32>, vector<16x16xf32> -> vector<16x16xf32>
    %cst_54 = arith.constant dense<0.000000e+00> : vector<16x16xf32>
    %125 = tpu.matmul %0, %120, %cst_54 {dimension_numbers = #tpu.dot_dimension_numbers<[1], [0], [0], [1], [0, 0, 1, 1], [], []>} : vector<16x8xf32>, vector<8x16xf32>, vector<16x16xf32> -> vector<16x16xf32>
    %126 = arith.addf %125, %123 : vector<16x16xf32>
    %cst_55 = arith.constant dense<0.000000e+00> : vector<16x16xf32>
    %127 = tpu.matmul %0, %121, %cst_55 {dimension_numbers = #tpu.dot_dimension_numbers<[1], [0], [0], [1], [0, 0, 1, 1], [], []>} : vector<16x8xf32>, vector<8x16xf32>, vector<16x16xf32> -> vector<16x16xf32>
    %128 = arith.mulf %124, %126 : vector<16x16xf32>
    %129 = vector.extract_strided_slice %128 {offsets = [0, 0], sizes = [16, 8], strides = [1, 1]} : vector<16x16xf32> to vector<16x8xf32>
    %cst_56 = arith.constant dense<0.000000e+00> : vector<16xf32>
    %130 = vector.multi_reduction <add>, %129, %cst_56 [1] : vector<16x8xf32> to vector<16xf32>
    %131 = vector.shape_cast %130 : vector<16xf32> to vector<16x1xf32>
    %132 = vector.extract_strided_slice %128 {offsets = [0, 8], sizes = [16, 8], strides = [1, 1]} : vector<16x16xf32> to vector<16x8xf32>
    %cst_57 = arith.constant dense<0.000000e+00> : vector<16xf32>
    %133 = vector.multi_reduction <add>, %132, %cst_57 [1] : vector<16x8xf32> to vector<16xf32>
    %134 = vector.shape_cast %133 : vector<16xf32> to vector<16x1xf32>
    %135 = tpu.concatenate %131, %134 in 1 : vector<16x1xf32>, vector<16x1xf32> -> vector<16x2xf32>
    %136 = vector.extract_strided_slice %135 {offsets = [0, 0], sizes = [16, 1], strides = [1, 1]} : vector<16x2xf32> to vector<16x1xf32>
    %cst_58 = arith.constant 5.000000e-01 : f32
    %137 = vector.broadcast %cst_58 : f32 to vector<16x8xf32>
    %138 = arith.cmpf ogt, %1, %137 : vector<16x8xf32>
    %cst_59 = arith.constant -1.000000e+30 : f32
    %139 = vector.shape_cast %136 : vector<16x1xf32> to vector<16x1xf32>
    %140 = vector.broadcast %139 : vector<16x1xf32> to vector<16x8xf32>
    %141 = vector.broadcast %cst_59 : f32 to vector<16x8xf32>
    %142 = arith.select %138, %140, %141 : vector<16x8xi1>, vector<16x8xf32>
    %cst_60 = arith.constant dense<0xFF800000> : vector<8xf32>
    %143 = vector.multi_reduction <maximumf>, %142, %cst_60 [0] : vector<16x8xf32> to vector<8xf32>
    %144 = vector.shape_cast %143 : vector<8xf32> to vector<1x8xf32>
    %cst_61 = arith.constant 5.000000e-01 : f32
    %145 = vector.broadcast %cst_61 : f32 to vector<16x8xf32>
    %146 = arith.cmpf ogt, %1, %145 : vector<16x8xf32>
    %cst_62 = arith.constant -1.000000e+30 : f32
    %147 = vector.shape_cast %144 : vector<1x8xf32> to vector<1x8xf32>
    %148 = vector.broadcast %147 : vector<1x8xf32> to vector<16x8xf32>
    %149 = vector.broadcast %cst_62 : f32 to vector<16x8xf32>
    %150 = arith.select %146, %148, %149 : vector<16x8xi1>, vector<16x8xf32>
    %cst_63 = arith.constant dense<0xFF800000> : vector<16xf32>
    %151 = vector.multi_reduction <maximumf>, %150, %cst_63 [1] : vector<16x8xf32> to vector<16xf32>
    %152 = vector.shape_cast %151 : vector<16xf32> to vector<16x1xf32>
    %153 = arith.subf %136, %152 : vector<16x1xf32>
    %154 = math.exp %153 : vector<16x1xf32>
    %cst_64 = arith.constant 5.000000e-01 : f32
    %155 = vector.broadcast %cst_64 : f32 to vector<16x8xf32>
    %156 = arith.cmpf ogt, %1, %155 : vector<16x8xf32>
    %cst_65 = arith.constant 0.000000e+00 : f32
    %157 = vector.shape_cast %154 : vector<16x1xf32> to vector<16x1xf32>
    %158 = vector.broadcast %157 : vector<16x1xf32> to vector<16x8xf32>
    %159 = vector.broadcast %cst_65 : f32 to vector<16x8xf32>
    %160 = arith.select %156, %158, %159 : vector<16x8xi1>, vector<16x8xf32>
    %cst_66 = arith.constant dense<0.000000e+00> : vector<8xf32>
    %161 = vector.multi_reduction <add>, %160, %cst_66 [0] : vector<16x8xf32> to vector<8xf32>
    %162 = vector.shape_cast %161 : vector<8xf32> to vector<1x8xf32>
    %cst_67 = arith.constant 5.000000e-01 : f32
    %163 = vector.broadcast %cst_67 : f32 to vector<16x8xf32>
    %164 = arith.cmpf ogt, %1, %163 : vector<16x8xf32>
    %cst_68 = arith.constant 0.000000e+00 : f32
    %165 = vector.shape_cast %162 : vector<1x8xf32> to vector<1x8xf32>
    %166 = vector.broadcast %165 : vector<1x8xf32> to vector<16x8xf32>
    %167 = vector.broadcast %cst_68 : f32 to vector<16x8xf32>
    %168 = arith.select %164, %166, %167 : vector<16x8xi1>, vector<16x8xf32>
    %cst_69 = arith.constant dense<0.000000e+00> : vector<16xf32>
    %169 = vector.multi_reduction <add>, %168, %cst_69 [1] : vector<16x8xf32> to vector<16xf32>
    %170 = vector.shape_cast %169 : vector<16xf32> to vector<16x1xf32>
    %171 = arith.divf %154, %170 : vector<16x1xf32>
    %172 = vector.extract_strided_slice %135 {offsets = [0, 1], sizes = [16, 1], strides = [1, 1]} : vector<16x2xf32> to vector<16x1xf32>
    %cst_70 = arith.constant 5.000000e-01 : f32
    %173 = vector.broadcast %cst_70 : f32 to vector<16x8xf32>
    %174 = arith.cmpf ogt, %1, %173 : vector<16x8xf32>
    %cst_71 = arith.constant -1.000000e+30 : f32
    %175 = vector.shape_cast %172 : vector<16x1xf32> to vector<16x1xf32>
    %176 = vector.broadcast %175 : vector<16x1xf32> to vector<16x8xf32>
    %177 = vector.broadcast %cst_71 : f32 to vector<16x8xf32>
    %178 = arith.select %174, %176, %177 : vector<16x8xi1>, vector<16x8xf32>
    %cst_72 = arith.constant dense<0xFF800000> : vector<8xf32>
    %179 = vector.multi_reduction <maximumf>, %178, %cst_72 [0] : vector<16x8xf32> to vector<8xf32>
    %180 = vector.shape_cast %179 : vector<8xf32> to vector<1x8xf32>
    %cst_73 = arith.constant 5.000000e-01 : f32
    %181 = vector.broadcast %cst_73 : f32 to vector<16x8xf32>
    %182 = arith.cmpf ogt, %1, %181 : vector<16x8xf32>
    %cst_74 = arith.constant -1.000000e+30 : f32
    %183 = vector.shape_cast %180 : vector<1x8xf32> to vector<1x8xf32>
    %184 = vector.broadcast %183 : vector<1x8xf32> to vector<16x8xf32>
    %185 = vector.broadcast %cst_74 : f32 to vector<16x8xf32>
    %186 = arith.select %182, %184, %185 : vector<16x8xi1>, vector<16x8xf32>
    %cst_75 = arith.constant dense<0xFF800000> : vector<16xf32>
    %187 = vector.multi_reduction <maximumf>, %186, %cst_75 [1] : vector<16x8xf32> to vector<16xf32>
    %188 = vector.shape_cast %187 : vector<16xf32> to vector<16x1xf32>
    %189 = arith.subf %172, %188 : vector<16x1xf32>
    %190 = math.exp %189 : vector<16x1xf32>
    %cst_76 = arith.constant 5.000000e-01 : f32
    %191 = vector.broadcast %cst_76 : f32 to vector<16x8xf32>
    %192 = arith.cmpf ogt, %1, %191 : vector<16x8xf32>
    %cst_77 = arith.constant 0.000000e+00 : f32
    %193 = vector.shape_cast %190 : vector<16x1xf32> to vector<16x1xf32>
    %194 = vector.broadcast %193 : vector<16x1xf32> to vector<16x8xf32>
    %195 = vector.broadcast %cst_77 : f32 to vector<16x8xf32>
    %196 = arith.select %192, %194, %195 : vector<16x8xi1>, vector<16x8xf32>
    %cst_78 = arith.constant dense<0.000000e+00> : vector<8xf32>
    %197 = vector.multi_reduction <add>, %196, %cst_78 [0] : vector<16x8xf32> to vector<8xf32>
    %198 = vector.shape_cast %197 : vector<8xf32> to vector<1x8xf32>
    %cst_79 = arith.constant 5.000000e-01 : f32
    %199 = vector.broadcast %cst_79 : f32 to vector<16x8xf32>
    %200 = arith.cmpf ogt, %1, %199 : vector<16x8xf32>
    %cst_80 = arith.constant 0.000000e+00 : f32
    %201 = vector.shape_cast %198 : vector<1x8xf32> to vector<1x8xf32>
    %202 = vector.broadcast %201 : vector<1x8xf32> to vector<16x8xf32>
    %203 = vector.broadcast %cst_80 : f32 to vector<16x8xf32>
    %204 = arith.select %200, %202, %203 : vector<16x8xi1>, vector<16x8xf32>
    %cst_81 = arith.constant dense<0.000000e+00> : vector<16xf32>
    %205 = vector.multi_reduction <add>, %204, %cst_81 [1] : vector<16x8xf32> to vector<16xf32>
    %206 = vector.shape_cast %205 : vector<16xf32> to vector<16x1xf32>
    %207 = arith.divf %190, %206 : vector<16x1xf32>
    %208 = tpu.concatenate %171, %207 in 1 : vector<16x1xf32>, vector<16x1xf32> -> vector<16x2xf32>
    %209 = arith.addf %127, %123 : vector<16x16xf32>
    %210 = vector.extract_strided_slice %209 {offsets = [0, 0], sizes = [16, 8], strides = [1, 1]} : vector<16x16xf32> to vector<16x8xf32>
    %211 = vector.extract_strided_slice %208 {offsets = [0, 0], sizes = [16, 1], strides = [1, 1]} : vector<16x2xf32> to vector<16x1xf32>
    %212 = vector.broadcast %211 : vector<16x1xf32> to vector<16x8xf32>
    %213 = arith.mulf %210, %212 : vector<16x8xf32>
    %214 = vector.extract_strided_slice %209 {offsets = [0, 8], sizes = [16, 8], strides = [1, 1]} : vector<16x16xf32> to vector<16x8xf32>
    %215 = vector.extract_strided_slice %208 {offsets = [0, 1], sizes = [16, 1], strides = [1, 1]} : vector<16x2xf32> to vector<16x1xf32>
    %216 = vector.broadcast %215 : vector<16x1xf32> to vector<16x8xf32>
    %217 = arith.mulf %214, %216 : vector<16x8xf32>
    %218 = tpu.concatenate %213, %217 in 1 : vector<16x8xf32>, vector<16x8xf32> -> vector<16x16xf32>
    %c0_82 = arith.constant 0 : index
    %c0_83 = arith.constant 0 : index
    %219 = vector.load %arg12[%c0_82, %c0_83] : memref<16x24xf32, #tpu.memory_space<vmem>>, vector<16x24xf32>
    %cst_84 = arith.constant dense<0.000000e+00> : vector<16x24xf32>
    %220 = tpu.matmul %218, %219, %cst_84 {dimension_numbers = #tpu.dot_dimension_numbers<[1], [0], [0], [1], [0, 0, 1, 1], [], []>} : vector<16x16xf32>, vector<16x24xf32>, vector<16x24xf32> -> vector<16x24xf32>
    %c0_85 = arith.constant 0 : index
    %c0_86 = arith.constant 0 : index
    %221 = vector.load %arg13[%c0_85, %c0_86] : memref<1x24xf32, #tpu.memory_space<vmem>>, vector<1x24xf32>
    %222 = vector.broadcast %221 : vector<1x24xf32> to vector<16x24xf32>
    %223 = arith.addf %220, %222 : vector<16x24xf32>
    %cst_87 = arith.constant 0.000000e+00 : f32
    %224 = vector.broadcast %cst_87 : f32 to vector<16x24xf32>
    %225 = arith.maximumf %223, %224 : vector<16x24xf32>
    %c0_88 = arith.constant 0 : index
    %c0_89 = arith.constant 0 : index
    %226 = vector.load %arg14[%c0_88, %c0_89] : memref<24x3xf32, #tpu.memory_space<vmem>>, vector<24x3xf32>
    %cst_90 = arith.constant dense<0.000000e+00> : vector<16x3xf32>
    %227 = tpu.matmul %225, %226, %cst_90 {dimension_numbers = #tpu.dot_dimension_numbers<[1], [0], [0], [1], [0, 0, 1, 1], [], []>} : vector<16x24xf32>, vector<24x3xf32>, vector<16x3xf32> -> vector<16x3xf32>
    %c0_91 = arith.constant 0 : index
    %c0_92 = arith.constant 0 : index
    %228 = vector.load %arg15[%c0_91, %c0_92] : memref<1x3xf32, #tpu.memory_space<vmem>>, vector<1x3xf32>
    %229 = vector.broadcast %228 : vector<1x3xf32> to vector<16x3xf32>
    %230 = arith.addf %227, %229 : vector<16x3xf32>
    %cst_93 = arith.constant 0.000000e+00 : f32
    %231 = vector.broadcast %cst_93 : f32 to vector<16x3xf32>
    %232 = arith.cmpf oge, %230, %231 : vector<16x3xf32>
    %cst_94 = arith.constant 0.00999999977 : f32
    %233 = vector.broadcast %cst_94 : f32 to vector<16x3xf32>
    %234 = arith.mulf %233, %230 : vector<16x3xf32>
    %235 = arith.select %232, %230, %234 : vector<16x3xi1>, vector<16x3xf32>
    %c0_95 = arith.constant 0 : index
    %c0_96 = arith.constant 0 : index
    %236 = vector.load %arg5[%c0_95, %c0_96] : memref<16x3xf32, #tpu.memory_space<vmem>>, vector<16x3xf32>
    %237 = arith.addf %235, %236 : vector<16x3xf32>
    %238 = vector.extract_strided_slice %237 {offsets = [0, 0], sizes = [16, 2], strides = [1, 1]} : vector<16x3xf32> to vector<16x2xf32>
    %239 = vector.extract_strided_slice %238 {offsets = [0, 0], sizes = [16, 1], strides = [1, 1]} : vector<16x2xf32> to vector<16x1xf32>
    %cst_97 = arith.constant 5.000000e-01 : f32
    %240 = vector.broadcast %cst_97 : f32 to vector<16x8xf32>
    %241 = arith.cmpf ogt, %0, %240 : vector<16x8xf32>
    %cst_98 = arith.constant -1.000000e+30 : f32
    %242 = vector.shape_cast %239 : vector<16x1xf32> to vector<16x1xf32>
    %243 = vector.broadcast %242 : vector<16x1xf32> to vector<16x8xf32>
    %244 = vector.broadcast %cst_98 : f32 to vector<16x8xf32>
    %245 = arith.select %241, %243, %244 : vector<16x8xi1>, vector<16x8xf32>
    %cst_99 = arith.constant dense<0xFF800000> : vector<8xf32>
    %246 = vector.multi_reduction <maximumf>, %245, %cst_99 [0] : vector<16x8xf32> to vector<8xf32>
    %247 = vector.shape_cast %246 : vector<8xf32> to vector<1x8xf32>
    %cst_100 = arith.constant 5.000000e-01 : f32
    %248 = vector.broadcast %cst_100 : f32 to vector<16x8xf32>
    %249 = arith.cmpf ogt, %0, %248 : vector<16x8xf32>
    %cst_101 = arith.constant -1.000000e+30 : f32
    %250 = vector.shape_cast %247 : vector<1x8xf32> to vector<1x8xf32>
    %251 = vector.broadcast %250 : vector<1x8xf32> to vector<16x8xf32>
    %252 = vector.broadcast %cst_101 : f32 to vector<16x8xf32>
    %253 = arith.select %249, %251, %252 : vector<16x8xi1>, vector<16x8xf32>
    %cst_102 = arith.constant dense<0xFF800000> : vector<16xf32>
    %254 = vector.multi_reduction <maximumf>, %253, %cst_102 [1] : vector<16x8xf32> to vector<16xf32>
    %255 = vector.shape_cast %254 : vector<16xf32> to vector<16x1xf32>
    %256 = arith.subf %239, %255 : vector<16x1xf32>
    %257 = math.exp %256 : vector<16x1xf32>
    %cst_103 = arith.constant 5.000000e-01 : f32
    %258 = vector.broadcast %cst_103 : f32 to vector<16x8xf32>
    %259 = arith.cmpf ogt, %0, %258 : vector<16x8xf32>
    %cst_104 = arith.constant 0.000000e+00 : f32
    %260 = vector.shape_cast %257 : vector<16x1xf32> to vector<16x1xf32>
    %261 = vector.broadcast %260 : vector<16x1xf32> to vector<16x8xf32>
    %262 = vector.broadcast %cst_104 : f32 to vector<16x8xf32>
    %263 = arith.select %259, %261, %262 : vector<16x8xi1>, vector<16x8xf32>
    %cst_105 = arith.constant dense<0.000000e+00> : vector<8xf32>
    %264 = vector.multi_reduction <add>, %263, %cst_105 [0] : vector<16x8xf32> to vector<8xf32>
    %265 = vector.shape_cast %264 : vector<8xf32> to vector<1x8xf32>
    %cst_106 = arith.constant 5.000000e-01 : f32
    %266 = vector.broadcast %cst_106 : f32 to vector<16x8xf32>
    %267 = arith.cmpf ogt, %0, %266 : vector<16x8xf32>
    %cst_107 = arith.constant 0.000000e+00 : f32
    %268 = vector.shape_cast %265 : vector<1x8xf32> to vector<1x8xf32>
    %269 = vector.broadcast %268 : vector<1x8xf32> to vector<16x8xf32>
    %270 = vector.broadcast %cst_107 : f32 to vector<16x8xf32>
    %271 = arith.select %267, %269, %270 : vector<16x8xi1>, vector<16x8xf32>
    %cst_108 = arith.constant dense<0.000000e+00> : vector<16xf32>
    %272 = vector.multi_reduction <add>, %271, %cst_108 [1] : vector<16x8xf32> to vector<16xf32>
    %273 = vector.shape_cast %272 : vector<16xf32> to vector<16x1xf32>
    %274 = arith.divf %257, %273 : vector<16x1xf32>
    %275 = vector.extract_strided_slice %238 {offsets = [0, 1], sizes = [16, 1], strides = [1, 1]} : vector<16x2xf32> to vector<16x1xf32>
    %cst_109 = arith.constant 5.000000e-01 : f32
    %276 = vector.broadcast %cst_109 : f32 to vector<16x8xf32>
    %277 = arith.cmpf ogt, %0, %276 : vector<16x8xf32>
    %cst_110 = arith.constant -1.000000e+30 : f32
    %278 = vector.shape_cast %275 : vector<16x1xf32> to vector<16x1xf32>
    %279 = vector.broadcast %278 : vector<16x1xf32> to vector<16x8xf32>
    %280 = vector.broadcast %cst_110 : f32 to vector<16x8xf32>
    %281 = arith.select %277, %279, %280 : vector<16x8xi1>, vector<16x8xf32>
    %cst_111 = arith.constant dense<0xFF800000> : vector<8xf32>
    %282 = vector.multi_reduction <maximumf>, %281, %cst_111 [0] : vector<16x8xf32> to vector<8xf32>
    %283 = vector.shape_cast %282 : vector<8xf32> to vector<1x8xf32>
    %cst_112 = arith.constant 5.000000e-01 : f32
    %284 = vector.broadcast %cst_112 : f32 to vector<16x8xf32>
    %285 = arith.cmpf ogt, %0, %284 : vector<16x8xf32>
    %cst_113 = arith.constant -1.000000e+30 : f32
    %286 = vector.shape_cast %283 : vector<1x8xf32> to vector<1x8xf32>
    %287 = vector.broadcast %286 : vector<1x8xf32> to vector<16x8xf32>
    %288 = vector.broadcast %cst_113 : f32 to vector<16x8xf32>
    %289 = arith.select %285, %287, %288 : vector<16x8xi1>, vector<16x8xf32>
    %cst_114 = arith.constant dense<0xFF800000> : vector<16xf32>
    %290 = vector.multi_reduction <maximumf>, %289, %cst_114 [1] : vector<16x8xf32> to vector<16xf32>
    %291 = vector.shape_cast %290 : vector<16xf32> to vector<16x1xf32>
    %292 = arith.subf %275, %291 : vector<16x1xf32>
    %293 = math.exp %292 : vector<16x1xf32>
    %cst_115 = arith.constant 5.000000e-01 : f32
    %294 = vector.broadcast %cst_115 : f32 to vector<16x8xf32>
    %295 = arith.cmpf ogt, %0, %294 : vector<16x8xf32>
    %cst_116 = arith.constant 0.000000e+00 : f32
    %296 = vector.shape_cast %293 : vector<16x1xf32> to vector<16x1xf32>
    %297 = vector.broadcast %296 : vector<16x1xf32> to vector<16x8xf32>
    %298 = vector.broadcast %cst_116 : f32 to vector<16x8xf32>
    %299 = arith.select %295, %297, %298 : vector<16x8xi1>, vector<16x8xf32>
    %cst_117 = arith.constant dense<0.000000e+00> : vector<8xf32>
    %300 = vector.multi_reduction <add>, %299, %cst_117 [0] : vector<16x8xf32> to vector<8xf32>
    %301 = vector.shape_cast %300 : vector<8xf32> to vector<1x8xf32>
    %cst_118 = arith.constant 5.000000e-01 : f32
    %302 = vector.broadcast %cst_118 : f32 to vector<16x8xf32>
    %303 = arith.cmpf ogt, %0, %302 : vector<16x8xf32>
    %cst_119 = arith.constant 0.000000e+00 : f32
    %304 = vector.shape_cast %301 : vector<1x8xf32> to vector<1x8xf32>
    %305 = vector.broadcast %304 : vector<1x8xf32> to vector<16x8xf32>
    %306 = vector.broadcast %cst_119 : f32 to vector<16x8xf32>
    %307 = arith.select %303, %305, %306 : vector<16x8xi1>, vector<16x8xf32>
    %cst_120 = arith.constant dense<0.000000e+00> : vector<16xf32>
    %308 = vector.multi_reduction <add>, %307, %cst_120 [1] : vector<16x8xf32> to vector<16xf32>
    %309 = vector.shape_cast %308 : vector<16xf32> to vector<16x1xf32>
    %310 = arith.divf %293, %309 : vector<16x1xf32>
    %311 = tpu.concatenate %274, %310 in 1 : vector<16x1xf32>, vector<16x1xf32> -> vector<16x2xf32>
    %312 = vector.extract_strided_slice %237 {offsets = [0, 2], sizes = [16, 1], strides = [1, 1]} : vector<16x3xf32> to vector<16x1xf32>
    %cst_121 = arith.constant 5.000000e-01 : f32
    %313 = vector.broadcast %cst_121 : f32 to vector<16x8xf32>
    %314 = arith.cmpf ogt, %1, %313 : vector<16x8xf32>
    %cst_122 = arith.constant -1.000000e+30 : f32
    %315 = vector.shape_cast %312 : vector<16x1xf32> to vector<16x1xf32>
    %316 = vector.broadcast %315 : vector<16x1xf32> to vector<16x8xf32>
    %317 = vector.broadcast %cst_122 : f32 to vector<16x8xf32>
    %318 = arith.select %314, %316, %317 : vector<16x8xi1>, vector<16x8xf32>
    %cst_123 = arith.constant dense<0xFF800000> : vector<8xf32>
    %319 = vector.multi_reduction <maximumf>, %318, %cst_123 [0] : vector<16x8xf32> to vector<8xf32>
    %320 = vector.shape_cast %319 : vector<8xf32> to vector<1x8xf32>
    %cst_124 = arith.constant 5.000000e-01 : f32
    %321 = vector.broadcast %cst_124 : f32 to vector<16x8xf32>
    %322 = arith.cmpf ogt, %1, %321 : vector<16x8xf32>
    %cst_125 = arith.constant -1.000000e+30 : f32
    %323 = vector.shape_cast %320 : vector<1x8xf32> to vector<1x8xf32>
    %324 = vector.broadcast %323 : vector<1x8xf32> to vector<16x8xf32>
    %325 = vector.broadcast %cst_125 : f32 to vector<16x8xf32>
    %326 = arith.select %322, %324, %325 : vector<16x8xi1>, vector<16x8xf32>
    %cst_126 = arith.constant dense<0xFF800000> : vector<16xf32>
    %327 = vector.multi_reduction <maximumf>, %326, %cst_126 [1] : vector<16x8xf32> to vector<16xf32>
    %328 = vector.shape_cast %327 : vector<16xf32> to vector<16x1xf32>
    %329 = arith.subf %312, %328 : vector<16x1xf32>
    %330 = math.exp %329 : vector<16x1xf32>
    %cst_127 = arith.constant 5.000000e-01 : f32
    %331 = vector.broadcast %cst_127 : f32 to vector<16x8xf32>
    %332 = arith.cmpf ogt, %1, %331 : vector<16x8xf32>
    %cst_128 = arith.constant 0.000000e+00 : f32
    %333 = vector.shape_cast %330 : vector<16x1xf32> to vector<16x1xf32>
    %334 = vector.broadcast %333 : vector<16x1xf32> to vector<16x8xf32>
    %335 = vector.broadcast %cst_128 : f32 to vector<16x8xf32>
    %336 = arith.select %332, %334, %335 : vector<16x8xi1>, vector<16x8xf32>
    %cst_129 = arith.constant dense<0.000000e+00> : vector<8xf32>
    %337 = vector.multi_reduction <add>, %336, %cst_129 [0] : vector<16x8xf32> to vector<8xf32>
    %338 = vector.shape_cast %337 : vector<8xf32> to vector<1x8xf32>
    %cst_130 = arith.constant 5.000000e-01 : f32
    %339 = vector.broadcast %cst_130 : f32 to vector<16x8xf32>
    %340 = arith.cmpf ogt, %1, %339 : vector<16x8xf32>
    %cst_131 = arith.constant 0.000000e+00 : f32
    %341 = vector.shape_cast %338 : vector<1x8xf32> to vector<1x8xf32>
    %342 = vector.broadcast %341 : vector<1x8xf32> to vector<16x8xf32>
    %343 = vector.broadcast %cst_131 : f32 to vector<16x8xf32>
    %344 = arith.select %340, %342, %343 : vector<16x8xi1>, vector<16x8xf32>
    %cst_132 = arith.constant dense<0.000000e+00> : vector<16xf32>
    %345 = vector.multi_reduction <add>, %344, %cst_132 [1] : vector<16x8xf32> to vector<16xf32>
    %346 = vector.shape_cast %345 : vector<16xf32> to vector<16x1xf32>
    %347 = arith.divf %330, %346 : vector<16x1xf32>
    %348 = tpu.concatenate %311, %347 in 1 : vector<16x2xf32>, vector<16x1xf32> -> vector<16x3xf32>
    %c0_133 = arith.constant 0 : index
    %c0_134 = arith.constant 0 : index
    %349 = vector.load %arg16[%c0_133, %c0_134] : memref<16x3xf32, #tpu.memory_space<vmem>>, vector<16x3xf32>
    tpu.vector_store %arg16[%c0_133, %c0_134], %348 {strides = array<i32>} : memref<16x3xf32, #tpu.memory_space<vmem>>, vector<16x3xf32>,
    return
  }
  func.func @transform_0(%arg0: i32) -> (i32, i32) {
    %c0_i32 = arith.constant 0 : i32
    %c0_i32_0 = arith.constant 0 : i32
    %c0_i32_1 = arith.constant 0 : i32
    return %c0_i32, %c0_i32_0 : i32, i32
  }
  func.func @transform_1(%arg0: i32) -> (i32, i32) {
    %c0_i32 = arith.constant 0 : i32
    %c0_i32_0 = arith.constant 0 : i32
    %c0_i32_1 = arith.constant 0 : i32
    return %c0_i32, %c0_i32_0 : i32, i32
  }
  func.func @transform_2(%arg0: i32) -> (i32, i32) {
    %c0_i32 = arith.constant 0 : i32
    %c0_i32_0 = arith.constant 0 : i32
    %c0_i32_1 = arith.constant 0 : i32
    return %c0_i32, %c0_i32_0 : i32, i32
  }
  func.func @transform_3(%arg0: i32) -> (i32, i32) {
    %c0_i32 = arith.constant 0 : i32
    %c0_i32_0 = arith.constant 0 : i32
    %c0_i32_1 = arith.constant 0 : i32
    return %c0_i32, %c0_i32_0 : i32, i32
  }
  func.func @transform_4(%arg0: i32) -> (i32, i32) {
    %c0_i32 = arith.constant 0 : i32
    %c0_i32_0 = arith.constant 0 : i32
    %c0_i32_1 = arith.constant 0 : i32
    return %c0_i32, %c0_i32_0 : i32, i32
  }
  func.func @transform_5(%arg0: i32) -> (i32, i32) {
    %c0_i32 = arith.constant 0 : i32
    %c0_i32_0 = arith.constant 0 : i32
    %c0_i32_1 = arith.constant 0 : i32
    return %c0_i32, %c0_i32_0 : i32, i32
  }
  func.func @transform_6(%arg0: i32) -> (i32, i32) {
    %c0_i32 = arith.constant 0 : i32
    %c0_i32_0 = arith.constant 0 : i32
    %c0_i32_1 = arith.constant 0 : i32
    return %c0_i32, %c0_i32_0 : i32, i32
  }
  func.func @transform_7(%arg0: i32) -> (i32, i32) {
    %c0_i32 = arith.constant 0 : i32
    %c0_i32_0 = arith.constant 0 : i32
    %c0_i32_1 = arith.constant 0 : i32
    return %c0_i32, %c0_i32_0 : i32, i32
  }
  func.func @transform_8(%arg0: i32) -> (i32, i32) {
    %c0_i32 = arith.constant 0 : i32
    %c0_i32_0 = arith.constant 0 : i32
    %c0_i32_1 = arith.constant 0 : i32
    return %c0_i32, %c0_i32_0 : i32, i32
  }
  func.func @transform_9(%arg0: i32) -> (i32, i32) {
    %c0_i32 = arith.constant 0 : i32
    %c0_i32_0 = arith.constant 0 : i32
    %c0_i32_1 = arith.constant 0 : i32
    return %c0_i32, %c0_i32_0 : i32, i32
  }
  func.func @transform_10(%arg0: i32) -> (i32, i32) {
    %c0_i32 = arith.constant 0 : i32
    %c0_i32_0 = arith.constant 0 : i32
    %c0_i32_1 = arith.constant 0 : i32
    return %c0_i32, %c0_i32_0 : i32, i32
  }
  func.func @transform_11(%arg0: i32) -> (i32, i32) {
    %c0_i32 = arith.constant 0 : i32
    %c0_i32_0 = arith.constant 0 : i32
    %c0_i32_1 = arith.constant 0 : i32
    return %c0_i32, %c0_i32_0 : i32, i32
  }
  func.func @transform_12(%arg0: i32) -> (i32, i32) {
    %c0_i32 = arith.constant 0 : i32
    %c0_i32_0 = arith.constant 0 : i32
    %c0_i32_1 = arith.constant 0 : i32
    return %c0_i32, %c0_i32_0 : i32, i32
  }
  func.func @transform_13(%arg0: i32) -> (i32, i32) {
    %c0_i32 = arith.constant 0 : i32
    %c0_i32_0 = arith.constant 0 : i32
    %c0_i32_1 = arith.constant 0 : i32
    return %c0_i32, %c0_i32_0 : i32, i32
  }
  func.func @transform_14(%arg0: i32) -> (i32, i32) {
    %c0_i32 = arith.constant 0 : i32
    %c0_i32_0 = arith.constant 0 : i32
    %c0_i32_1 = arith.constant 0 : i32
    return %c0_i32, %c0_i32_0 : i32, i32
  }
  func.func @transform_15(%arg0: i32) -> (i32, i32) {
    %c0_i32 = arith.constant 0 : i32
    %c0_i32_0 = arith.constant 0 : i32
    %c0_i32_1 = arith.constant 0 : i32
    return %c0_i32, %c0_i32_0 : i32, i32
  }
}

</mosaic_0001>

<llo_original>
// kernel: transformer_net.1
$region0: #{transformer_net.1}
  #allocation0 [shape = 'u32[]', space=smem, size = 0x4, offset = 0x4, fixed_abs, tag = 'smem constant byte address 0x4 - core index']
  #allocation1 [shape = 'u32[72,128]{1,0:T(1,128)}', space=vmem, size = 0x9000, scoped, tag = 'internal scratch']
  %s0 = inlined_call_operand.vmem [shape: f32[8,6], index: 0, kind: input, shape index: {}]
  %s1 = inlined_call_operand.vmem [shape: f32[16,4], index: 1, kind: input, shape index: {}]
  %s2 = inlined_call_operand.vmem [shape: f32[16,8], index: 2, kind: input, shape index: {}]
  %s3 = inlined_call_operand.vmem [shape: f32[16,8], index: 3, kind: input, shape index: {}]
  %s4 = inlined_call_operand.vmem [shape: f32[16,3], index: 4, kind: input, shape index: {}]
  %s5 = inlined_call_operand.vmem [shape: f32[6,64], index: 5, kind: input, shape index: {}]
  %s6 = inlined_call_operand.vmem [shape: f32[1,64], index: 6, kind: input, shape index: {}]
  %s7 = inlined_call_operand.vmem [shape: f32[4,16], index: 7, kind: input, shape index: {}]
  %s8 = inlined_call_operand.vmem [shape: f32[16,64], index: 8, kind: input, shape index: {}]
  %s9 = inlined_call_operand.vmem [shape: f32[1,64], index: 9, kind: input, shape index: {}]
  %s10 = inlined_call_operand.vmem [shape: f32[4,16], index: 10, kind: input, shape index: {}]
  %s11 = inlined_call_operand.vmem [shape: f32[16,24], index: 11, kind: input, shape index: {}]
  %s12 = inlined_call_operand.vmem [shape: f32[1,24], index: 12, kind: input, shape index: {}]
  %s13 = inlined_call_operand.vmem [shape: f32[24,3], index: 13, kind: input, shape index: {}]
  %s14 = inlined_call_operand.vmem [shape: f32[1,3], index: 14, kind: input, shape index: {}]
  %s15 = inlined_call_operand.vmem [shape: f32[16,3], index: 15, kind: output, shape index: {}]
  %s16 = sld [smem:[#allocation0]]
  $region70: #{transformer_net.1} parent=0
    _
  %s18 = ssub.s32 1, %s16
  %s19 = scalar_select 0, %s18, %s16
  // Predicated region
  $region2: #{transformer_net.1} parent=0 // pred_check
    _
  $region3: #{transformer_net.1} parent=0 // pred_check_branch
    %21 = sbr.rel (0) target = $region5
  $region4: #{transformer_net.1} parent=0 // pred_region
    _
  $region5: #{transformer_net.1} parent=0 // pred_fallthru
    _
  // Predicated region
  $region6: #{transformer_net.1} parent=0 // pred_check
    _
  $region7: #{transformer_net.1} parent=0 // pred_check_branch
    %23 = sbr.rel (0) target = $region9
  $region8: #{transformer_net.1} parent=0 // pred_region
    _
  $region9: #{transformer_net.1} parent=0 // pred_fallthru
    _
  // Predicated region
  $region10: #{transformer_net.1} parent=0 // pred_check
    _
  $region11: #{transformer_net.1} parent=0 // pred_check_branch
    %25 = sbr.rel (0) target = $region13
  $region12: #{transformer_net.1} parent=0 // pred_region
    _
  $region13: #{transformer_net.1} parent=0 // pred_fallthru
    _
  // Predicated region
  $region14: #{transformer_net.1} parent=0 // pred_check
    _
  $region15: #{transformer_net.1} parent=0 // pred_check_branch
    %27 = sbr.rel (0) target = $region17
  $region16: #{transformer_net.1} parent=0 // pred_region
    _
  $region17: #{transformer_net.1} parent=0 // pred_fallthru
    _
  // Predicated region
  $region18: #{transformer_net.1} parent=0 // pred_check
    _
  $region19: #{transformer_net.1} parent=0 // pred_check_branch
    %29 = sbr.rel (0) target = $region21
  $region20: #{transformer_net.1} parent=0 // pred_region
    _
  $region21: #{transformer_net.1} parent=0 // pred_fallthru
    _
  // Predicated region
  $region22: #{transformer_net.1} parent=0 // pred_check
    _
  $region23: #{transformer_net.1} parent=0 // pred_check_branch
    %31 = sbr.rel (0) target = $region25
  $region24: #{transformer_net.1} parent=0 // pred_region
    _
  $region25: #{transformer_net.1} parent=0 // pred_fallthru
    _
  // Predicated region
  $region26: #{transformer_net.1} parent=0 // pred_check
    _
  $region27: #{transformer_net.1} parent=0 // pred_check_branch
    %33 = sbr.rel (0) target = $region29
  $region28: #{transformer_net.1} parent=0 // pred_region
    _
  $region29: #{transformer_net.1} parent=0 // pred_fallthru
    _
  // Predicated region
  $region30: #{transformer_net.1} parent=0 // pred_check
    _
  $region31: #{transformer_net.1} parent=0 // pred_check_branch
    %35 = sbr.rel (0) target = $region33
  $region32: #{transformer_net.1} parent=0 // pred_region
    _
  $region33: #{transformer_net.1} parent=0 // pred_fallthru
    _
  // Predicated region
  $region34: #{transformer_net.1} parent=0 // pred_check
    _
  $region35: #{transformer_net.1} parent=0 // pred_check_branch
    %37 = sbr.rel (0) target = $region37
  $region36: #{transformer_net.1} parent=0 // pred_region
    _
  $region37: #{transformer_net.1} parent=0 // pred_fallthru
    _
  // Predicated region
  $region38: #{transformer_net.1} parent=0 // pred_check
    _
  $region39: #{transformer_net.1} parent=0 // pred_check_branch
    %39 = sbr.rel (0) target = $region41
  $region40: #{transformer_net.1} parent=0 // pred_region
    _
  $region41: #{transformer_net.1} parent=0 // pred_fallthru
    _
  // Predicated region
  $region42: #{transformer_net.1} parent=0 // pred_check
    _
  $region43: #{transformer_net.1} parent=0 // pred_check_branch
    %41 = sbr.rel (0) target = $region45
  $region44: #{transformer_net.1} parent=0 // pred_region
    _
  $region45: #{transformer_net.1} parent=0 // pred_fallthru
    _
  // Predicated region
  $region46: #{transformer_net.1} parent=0 // pred_check
    _
  $region47: #{transformer_net.1} parent=0 // pred_check_branch
    %43 = sbr.rel (0) target = $region49
  $region48: #{transformer_net.1} parent=0 // pred_region
    _
  $region49: #{transformer_net.1} parent=0 // pred_fallthru
    _
  // Predicated region
  $region50: #{transformer_net.1} parent=0 // pred_check
    _
  $region51: #{transformer_net.1} parent=0 // pred_check_branch
    %45 = sbr.rel (0) target = $region53
  $region52: #{transformer_net.1} parent=0 // pred_region
    _
  $region53: #{transformer_net.1} parent=0 // pred_fallthru
    _
  // Predicated region
  $region54: #{transformer_net.1} parent=0 // pred_check
    _
  $region55: #{transformer_net.1} parent=0 // pred_check_branch
    %47 = sbr.rel (0) target = $region57
  $region56: #{transformer_net.1} parent=0 // pred_region
    _
  $region57: #{transformer_net.1} parent=0 // pred_fallthru
    _
  // Predicated region
  $region58: #{transformer_net.1} parent=0 // pred_check
    _
  $region59: #{transformer_net.1} parent=0 // pred_check_branch
    %49 = sbr.rel (0) target = $region61
  $region60: #{transformer_net.1} parent=0 // pred_region
    _
  $region61: #{transformer_net.1} parent=0 // pred_fallthru
    _
  %v50 = vld [vmem:[%s2] sm:$0xff]
  %v51 = vld [vmem:[%s2 + $0x8] sm:$0xff]
  %v52 = vld [vmem:[%s3] sm:$0xff]
  %v53 = vld [vmem:[%s3 + $0x8] sm:$0xff]
  %v54 = vld [vmem:[%s1] sm:$0xff]
  %v55 = vld [vmem:[%s1 + $0x8] sm:$0xff]
  %v56 = vld [vmem:[%s0] sm:$0xff]
  %v57 = vld [vmem:[%s5] sm:$0x3f]
  %v58 = vld [vmem:[%s6] sm:$0x1]
  %v60 = vperm.slane %v58, 0
  %vm62 = vcmask 48128
  %v64 = vsel %vm62, %v56, 0
  %vm66 = vcmask 1045504
  %v68 = vsel %vm66, %v57, 0
  %70 = vmatpush.msra.mxu0 0.0
  %71 = vmatpush.msra.mxu0 0.0
  %72 = vmatpush.msra.mxu0 0.0
  %73 = vmatpush.msra.mxu0 0.0
  %74 = vmatpush.msra.mxu0 0.0
  %75 = vmatpush.msra.mxu0 0.0
  %76 = vmatpush.msra.mxu0 0.0
  %77 = vmatpush.msra.mxu0 0.0
  %78 = vmatpush.msra.mxu0 0.0
  %79 = vmatpush.msra.mxu0 0.0
  %80 = vmatpush.msra.mxu0 0.0
  %81 = vmatpush.msra.mxu0 0.0
  %82 = vmatpush.msra.mxu0 0.0
  %83 = vmatpush.msra.mxu0 0.0
  %84 = vmatpush.msra.mxu0 0.0
  %85 = vmatpush.msra.mxu0 %v68
  %86 = vmatmul.f32.gmra.mxu0 %v64
  %v87 = vpop.f32.mrf.mxu0
  %v88 = vadd.f32 %v60, %v87
  %89 = vdwg.mxu0
  %v90 = vld [vmem:[%s7] sm:$0xf]
  %vm91 = vcmask 31744
  %v93 = vsel %vm91, %v54, 0
  %v96 = vsel %vm91, %v55, 0
  %vm98 = vcmask 1043456
  %v100 = vsel %vm98, %v90, 0
  %102 = vmatpush.msra.mxu0 0.0
  %103 = vmatpush.msra.mxu0 0.0
  %104 = vmatpush.msra.mxu0 0.0
  %105 = vmatpush.msra.mxu0 0.0
  %106 = vmatpush.msra.mxu0 0.0
  %107 = vmatpush.msra.mxu0 0.0
  %108 = vmatpush.msra.mxu0 0.0
  %109 = vmatpush.msra.mxu0 0.0
  %110 = vmatpush.msra.mxu0 0.0
  %111 = vmatpush.msra.mxu0 0.0
  %112 = vmatpush.msra.mxu0 0.0
  %113 = vmatpush.msra.mxu0 0.0
  %114 = vmatpush.msra.mxu0 0.0
  %115 = vmatpush.msra.mxu0 0.0
  %116 = vmatpush.msra.mxu0 0.0
  %117 = vmatpush.msra.mxu0 %v100
  %118 = vmatmul.f32.gmra.mxu0 %v93
  %v119 = vpop.f32.mrf.mxu0
  %v120 = vadd.f32 0.0, %v119
  %121 = vmatmul.f32.gmra.mxu0 %v96
  %v122 = vpop.f32.mrf.mxu0
  %v123 = vadd.f32 0.0, %v122
  %124 = vdwg.mxu0
  %vm125 = vcmask 64512
  %v127 = vsel %vm125, %v52, 0
  %v130 = vsel %vm125, %v53, 0
  %132 = vmatpush.msra.mxu0 0.0
  %133 = vmatpush.msra.mxu0 0.0
  %134 = vmatpush.msra.mxu0 0.0
  %135 = vmatpush.msra.mxu0 0.0
  %136 = vmatpush.msra.mxu0 0.0
  %137 = vmatpush.msra.mxu0 0.0
  %138 = vmatpush.msra.mxu0 0.0
  %139 = vmatpush.msra.mxu0 0.0
  %140 = vmatpush.msra.mxu0 0.0
  %141 = vmatpush.msra.mxu0 0.0
  %142 = vmatpush.msra.mxu0 0.0
  %143 = vmatpush.msra.mxu0 0.0
  %144 = vmatpush.msra.mxu0 0.0
  %145 = vmatpush.msra.mxu0 0.0
  %146 = vmatpush.msra.mxu0 0.0
  %147 = vmatpush.msra.mxu0 %v88
  %148 = vmatmul.f32.gmra.mxu0 %v127
  %v149 = vpop.f32.mrf.mxu0
  %v150 = vadd.f32 0.0, %v149
  %151 = vmatmul.f32.gmra.mxu0 %v130
  %v152 = vpop.f32.mrf.mxu0
  %v153 = vadd.f32 0.0, %v152
  %154 = vdwg.mxu0
  %156 = vrot.lane.b32.xlu0 %v88, 112
  %v157 = vpop.permute.xlu0 %156
  %v160 = vsel %vm125, %v50, 0
  %v163 = vsel %vm125, %v51, 0
  %165 = vmatpush.msra.mxu0 0.0
  %166 = vmatpush.msra.mxu0 0.0
  %167 = vmatpush.msra.mxu0 0.0
  %168 = vmatpush.msra.mxu0 0.0
  %169 = vmatpush.msra.mxu0 0.0
  %170 = vmatpush.msra.mxu0 0.0
  %171 = vmatpush.msra.mxu0 0.0
  %172 = vmatpush.msra.mxu0 0.0
  %173 = vmatpush.msra.mxu0 0.0
  %174 = vmatpush.msra.mxu0 0.0
  %175 = vmatpush.msra.mxu0 0.0
  %176 = vmatpush.msra.mxu0 0.0
  %177 = vmatpush.msra.mxu0 0.0
  %178 = vmatpush.msra.mxu0 0.0
  %179 = vmatpush.msra.mxu0 0.0
  %180 = vmatpush.msra.mxu0 %v157
  %181 = vmatmul.f32.gmra.mxu0 %v160
  %v182 = vpop.f32.mrf.mxu0
  %v183 = vadd.f32 %v120, %v182
  %184 = vmatmul.f32.gmra.mxu0 %v163
  %v185 = vpop.f32.mrf.mxu0
  %v186 = vadd.f32 %v123, %v185
  %187 = vdwg.mxu0
  %v188 = vmul.f32 %v150, %v183
  %v189 = vmul.f32 %v153, %v186
  %v190 = vsel %vm125, %v188, 0.0
  %191 = vadd.xlane.f32.xlu0 %v190
  %v192 = vpop.xlane.xlu0 %191
  %v193 = vsel %vm125, %v189, 0.0
  %194 = vadd.xlane.f32.xlu0 %v193
  %v195 = vpop.xlane.xlu0 %194
  %198 = vrot.lane.b32.xlu0 %v188, 120
  %v199 = vpop.permute.xlu0 %198
  %200 = vrot.lane.b32.xlu0 %v189, 120
  %v201 = vpop.permute.xlu0 %200
  %v204 = vsel %vm125, %v199, 0.0
  %205 = vadd.xlane.f32.xlu0 %v204
  %v206 = vpop.xlane.xlu0 %205
  %v207 = vsel %vm125, %v201, 0.0
  %208 = vadd.xlane.f32.xlu0 %v207
  %v209 = vpop.xlane.xlu0 %208
  %vm210 = vcmask 7168
  %v211 = vsel %vm210, %v192, %v206
  %v212 = vsel %vm210, %v195, %v209
  %vm213 = vcmp.gt.f32.partialorder %v52, 0.5
  %vm214 = vcmp.gt.f32.partialorder %v53, 0.5
  %216 = vset.pattern.permute.xlu0 0
  %217 = vperm.xlu0 %216, %v211
  %v218 = vpop.permute.xlu0 %217
  %221 = vset.pattern.permute.xlu0 0
  %222 = vperm.xlu0 %221, %v212
  %v223 = vpop.permute.xlu0 %222
  %v225 = vsel %vm213, %v218, -1e+30
  %v226 = vsel %vm214, %v223, -1e+30
  %v227 = vsel %vm125, %v225, -inf
  %v228 = vsel %vm125, %v226, -inf
  %v229 = vmax.f32 %v227, %v228
  %v230 = vrot.slane %v229, 4
  %v231 = vmax.f32 %v229, %v230
  %v232 = vrot.slane %v231, 2
  %v233 = vmax.f32 %v231, %v232
  %v234 = vrot.slane %v233, 1
  %v235 = vmax.f32 %v233, %v234
  %v236 = vsel %vm213, %v235, -1e+30
  %v237 = vsel %vm214, %v235, -1e+30
  %v238 = vsel %vm125, %v236, -inf
  %239 = vmax.xlane.f32.xlu0 %v238
  %v240 = vpop.xlane.xlu0 %239
  %v241 = vsel %vm125, %v237, -inf
  %242 = vmax.xlane.f32.xlu0 %v241
  %v243 = vpop.xlane.xlu0 %242
  %v244 = vsub.f32 %v211, %v240
  %v245 = vsub.f32 %v212, %v243
  %v246 = vmul.f32 %v244, 1.442695
  %v247 = vpow.pop %v246
  %v248 = vmul.f32 %v245, 1.442695
  %v249 = vpow.pop %v248
  %251 = vset.pattern.permute.xlu0 0
  %252 = vperm.xlu0 %251, %v247
  %v253 = vpop.permute.xlu0 %252
  %256 = vset.pattern.permute.xlu0 0
  %257 = vperm.xlu0 %256, %v249
  %v258 = vpop.permute.xlu0 %257
  %v260 = vsel %vm213, %v253, 0.0
  %v261 = vsel %vm214, %v258, 0.0
  %v262 = vsel %vm125, %v260, 0.0
  %v263 = vsel %vm125, %v261, 0.0
  %v264 = vadd.f32 %v262, %v263
  %v265 = vrot.slane %v264, 4
  %v266 = vadd.f32 %v264, %v265
  %v267 = vrot.slane %v266, 2
  %v268 = vadd.f32 %v266, %v267
  %v269 = vrot.slane %v268, 1
  %v270 = vadd.f32 %v268, %v269
  %v271 = vsel %vm213, %v270, 0.0
  %v272 = vsel %vm214, %v270, 0.0
  %v273 = vsel %vm125, %v271, 0.0
  %274 = vadd.xlane.f32.xlu0 %v273
  %v275 = vpop.xlane.xlu0 %274
  %v276 = vsel %vm125, %v272, 0.0
  %277 = vadd.xlane.f32.xlu0 %v276
  %v278 = vpop.xlane.xlu0 %277
  %v279 = vrcp.pop %v275
  %v280 = vmul.f32 %v275, %v279
  %v281 = vsub.f32 1.0, %v280
  %v282 = vmul.f32 %v279, %v281
  %v283 = vadd.f32 %v279, %v282
  %vm284 = vweird.f32 %v275
  %vm285 = vweird.f32 %v279
  %vm286 = vmor %vm284, %vm285
  %v287 = vsel %vm286, %v279, %v283
  %v288 = vand.u32 2147483647, %v275
  %vm289 = vcmp.eq.f32.partialorder %v288, 8.507059e+37
  %v290 = vand.u32 %v275, 2147483648
  %v291 = vor.u32 1.1754944e-38, %v290
  %v292 = vsel %vm289, %v291, %v287
  %v293 = vmul.f32 %v247, %v292
  %v294 = vrcp.pop %v278
  %v295 = vmul.f32 %v278, %v294
  %v296 = vsub.f32 1.0, %v295
  %v297 = vmul.f32 %v294, %v296
  %v298 = vadd.f32 %v294, %v297
  %vm299 = vweird.f32 %v278
  %vm300 = vweird.f32 %v294
  %vm301 = vmor %vm299, %vm300
  %v302 = vsel %vm301, %v294, %v298
  %v303 = vand.u32 2147483647, %v278
  %vm304 = vcmp.eq.f32.partialorder %v303, 8.507059e+37
  %v305 = vand.u32 %v278, 2147483648
  %v306 = vor.u32 1.1754944e-38, %v305
  %v307 = vsel %vm304, %v306, %v302
  %v308 = vmul.f32 %v249, %v307
  %309 = vset.pattern.permute.xlu0 1
  %310 = vperm.xlu0 %309, %v211
  %v311 = vpop.permute.xlu0 %310
  %313 = vset.pattern.permute.xlu0 1
  %314 = vperm.xlu0 %313, %v212
  %v315 = vpop.permute.xlu0 %314
  %v317 = vsel %vm213, %v311, -1e+30
  %v318 = vsel %vm214, %v315, -1e+30
  %v319 = vsel %vm125, %v317, -inf
  %v320 = vsel %vm125, %v318, -inf
  %v321 = vmax.f32 %v319, %v320
  %v322 = vrot.slane %v321, 4
  %v323 = vmax.f32 %v321, %v322
  %v324 = vrot.slane %v323, 2
  %v325 = vmax.f32 %v323, %v324
  %v326 = vrot.slane %v325, 1
  %v327 = vmax.f32 %v325, %v326
  %v328 = vsel %vm213, %v327, -1e+30
  %v329 = vsel %vm214, %v327, -1e+30
  %v330 = vsel %vm125, %v328, -inf
  %331 = vmax.xlane.f32.xlu0 %v330
  %v332 = vpop.xlane.xlu0 %331
  %v333 = vsel %vm125, %v329, -inf
  %334 = vmax.xlane.f32.xlu0 %v333
  %v335 = vpop.xlane.xlu0 %334
  %v336 = vsub.f32 %v211, %v332
  %v337 = vsub.f32 %v212, %v335
  %v338 = vmul.f32 %v336, 1.442695
  %v339 = vpow.pop %v338
  %v340 = vmul.f32 %v337, 1.442695
  %v341 = vpow.pop %v340
  %343 = vset.pattern.permute.xlu0 1
  %344 = vperm.xlu0 %343, %v339
  %v345 = vpop.permute.xlu0 %344
  %348 = vset.pattern.permute.xlu0 1
  %349 = vperm.xlu0 %348, %v341
  %v350 = vpop.permute.xlu0 %349
  %v352 = vsel %vm213, %v345, 0.0
  %v353 = vsel %vm214, %v350, 0.0
  %v354 = vsel %vm125, %v352, 0.0
  %v355 = vsel %vm125, %v353, 0.0
  %v356 = vadd.f32 %v354, %v355
  %v357 = vrot.slane %v356, 4
  %v358 = vadd.f32 %v356, %v357
  %v359 = vrot.slane %v358, 2
  %v360 = vadd.f32 %v358, %v359
  %v361 = vrot.slane %v360, 1
  %v362 = vadd.f32 %v360, %v361
  %v363 = vsel %vm213, %v362, 0.0
  %v364 = vsel %vm214, %v362, 0.0
  %v365 = vsel %vm125, %v363, 0.0
  %366 = vadd.xlane.f32.xlu0 %v365
  %v367 = vpop.xlane.xlu0 %366
  %v368 = vsel %vm125, %v364, 0.0
  %369 = vadd.xlane.f32.xlu0 %v368
  %v370 = vpop.xlane.xlu0 %369
  %v371 = vrcp.pop %v367
  %v372 = vmul.f32 %v367, %v371
  %v373 = vsub.f32 1.0, %v372
  %v374 = vmul.f32 %v371, %v373
  %v375 = vadd.f32 %v371, %v374
  %vm376 = vweird.f32 %v367
  %vm377 = vweird.f32 %v371
  %vm378 = vmor %vm376, %vm377
  %v379 = vsel %vm378, %v371, %v375
  %v380 = vand.u32 2147483647, %v367
  %vm381 = vcmp.eq.f32.partialorder %v380, 8.507059e+37
  %v382 = vand.u32 %v367, 2147483648
  %v383 = vor.u32 1.1754944e-38, %v382
  %v384 = vsel %vm381, %v383, %v379
  %v385 = vmul.f32 %v339, %v384
  %v386 = vrcp.pop %v370
  %v387 = vmul.f32 %v370, %v386
  %v388 = vsub.f32 1.0, %v387
  %v389 = vmul.f32 %v386, %v388
  %v390 = vadd.f32 %v386, %v389
  %vm391 = vweird.f32 %v370
  %vm392 = vweird.f32 %v386
  %vm393 = vmor %vm391, %vm392
  %v394 = vsel %vm393, %v386, %v390
  %v395 = vand.u32 2147483647, %v370
  %vm396 = vcmp.eq.f32.partialorder %v395, 8.507059e+37
  %v397 = vand.u32 %v370, 2147483648
  %v398 = vor.u32 1.1754944e-38, %v397
  %v399 = vsel %vm396, %v398, %v394
  %v400 = vmul.f32 %v341, %v399
  %v401 = vsel %vm210, %v293, %v385
  %v402 = vsel %vm210, %v308, %v400
  %403 = vrot.lane.b32.xlu0 %v88, 96
  %v404 = vpop.permute.xlu0 %403
  %406 = vmatpush.msra.mxu0 0.0
  %407 = vmatpush.msra.mxu0 0.0
  %408 = vmatpush.msra.mxu0 0.0
  %409 = vmatpush.msra.mxu0 0.0
  %410 = vmatpush.msra.mxu0 0.0
  %411 = vmatpush.msra.mxu0 0.0
  %412 = vmatpush.msra.mxu0 0.0
  %413 = vmatpush.msra.mxu0 0.0
  %414 = vmatpush.msra.mxu0 0.0
  %415 = vmatpush.msra.mxu0 0.0
  %416 = vmatpush.msra.mxu0 0.0
  %417 = vmatpush.msra.mxu0 0.0
  %418 = vmatpush.msra.mxu0 0.0
  %419 = vmatpush.msra.mxu0 0.0
  %420 = vmatpush.msra.mxu0 0.0
  %421 = vmatpush.msra.mxu0 %v404
  %422 = vmatmul.f32.gmra.mxu0 %v160
  %v423 = vpop.f32.mrf.mxu0
  %v424 = vadd.f32 %v120, %v423
  %425 = vmatmul.f32.gmra.mxu0 %v163
  %v426 = vpop.f32.mrf.mxu0
  %v427 = vadd.f32 %v123, %v426
  %428 = vdwg.mxu0
  %430 = vset.pattern.permute.xlu0 0
  %431 = vperm.xlu0 %430, %v401
  %v432 = vpop.permute.xlu0 %431
  %435 = vset.pattern.permute.xlu0 0
  %436 = vperm.xlu0 %435, %v402
  %v437 = vpop.permute.xlu0 %436
  %v439 = vmul.f32 %v424, %v432
  %v440 = vmul.f32 %v427, %v437
  %441 = vset.pattern.permute.xlu0 1
  %442 = vperm.xlu0 %441, %v401
  %v443 = vpop.permute.xlu0 %442
  %445 = vset.pattern.permute.xlu0 1
  %446 = vperm.xlu0 %445, %v402
  %v447 = vpop.permute.xlu0 %446
  %v449 = vmul.f32 %v424, %v443
  %v450 = vmul.f32 %v427, %v447
  %v451 = vsel %vm125, %v439, %v449
  %v452 = vsel %vm125, %v440, %v450
  %453 = vxpose.xlu0.b32.start [1/16] %v52, 128
  %454 = vxpose.xlu0.b32.cont [2/16] %v53, 128
  %455 = vxpose.xlu0.b32.cont [3/16] 0.0, 128
  %456 = vxpose.xlu0.b32.cont [4/16] 0.0, 128
  %457 = vxpose.xlu0.b32.cont [5/16] 0.0, 128
  %458 = vxpose.xlu0.b32.cont [6/16] 0.0, 128
  %459 = vxpose.xlu0.b32.cont [7/16] 0.0, 128
  %460 = vxpose.xlu0.b32.cont [8/16] 0.0, 128
  %461 = vxpose.xlu0.b32.cont [9/16] 0.0, 128
  %462 = vxpose.xlu0.b32.cont [10/16] 0.0, 128
  %463 = vxpose.xlu0.b32.cont [11/16] 0.0, 128
  %464 = vxpose.xlu0.b32.cont [12/16] 0.0, 128
  %465 = vxpose.xlu0.b32.cont [13/16] 0.0, 128
  %466 = vxpose.xlu0.b32.cont [14/16] 0.0, 128
  %467 = vxpose.xlu0.b32.cont [15/16] 0.0, 128
  %468 = vxpose.xlu0.b32.end [16/16] 0.0, 128
  %v469 = vpop.trf.xlu0
  %v470 = vpop.trf.xlu0
  %v471 = vpop.trf.xlu0
  %v472 = vpop.trf.xlu0
  %v473 = vpop.trf.xlu0
  %v474 = vpop.trf.xlu0
  %v475 = vpop.trf.xlu0
  %v476 = vpop.trf.xlu0
  %v477 = vpop.trf.xlu0
  %v478 = vpop.trf.xlu0
  %v479 = vpop.trf.xlu0
  %v480 = vpop.trf.xlu0
  %v481 = vpop.trf.xlu0
  %v482 = vpop.trf.xlu0
  %v483 = vpop.trf.xlu0
  %v484 = vpop.trf.xlu0
  %485 = vrot.lane.b32.xlu0 %v88, 80
  %v486 = vpop.permute.xlu0 %485
  %vm488 = vcmask 130048
  %v490 = vsel %vm488, %v469, 0
  %492 = vmatpush.msra.mxu0 0.0
  %493 = vmatpush.msra.mxu0 0.0
  %494 = vmatpush.msra.mxu0 0.0
  %495 = vmatpush.msra.mxu0 0.0
  %496 = vmatpush.msra.mxu0 0.0
  %497 = vmatpush.msra.mxu0 0.0
  %498 = vmatpush.msra.mxu0 0.0
  %499 = vmatpush.msra.mxu0 0.0
  %500 = vmatpush.msra.mxu0 0.0
  %501 = vmatpush.msra.mxu0 0.0
  %502 = vmatpush.msra.mxu0 0.0
  %503 = vmatpush.msra.mxu0 0.0
  %504 = vmatpush.msra.mxu0 0.0
  %505 = vmatpush.msra.mxu0 0.0
  %506 = vmatpush.msra.mxu0 %v452
  %507 = vmatpush.msra.mxu0 %v451
  %508 = vmatmul.f32.gmra.mxu0 %v490
  %v509 = vpop.f32.mrf.mxu0
  %v510 = vadd.f32 %v486, %v509
  %511 = vdwg.mxu0
  %v512 = vmax.f32 %v510, 0.0
  %v513 = vld [vmem:[%s8] sm:$0xff]
  %v514 = vld [vmem:[%s8 + $0x8] sm:$0xff]
  %v515 = vld [vmem:[%s9] sm:$0x1]
  %v517 = vperm.slane %v515, 0
  %v520 = vsel %vm488, %v512, 0
  %522 = vmatpush.msra.mxu0 0.0
  %523 = vmatpush.msra.mxu0 0.0
  %524 = vmatpush.msra.mxu0 0.0
  %525 = vmatpush.msra.mxu0 0.0
  %526 = vmatpush.msra.mxu0 0.0
  %527 = vmatpush.msra.mxu0 0.0
  %528 = vmatpush.msra.mxu0 0.0
  %529 = vmatpush.msra.mxu0 0.0
  %530 = vmatpush.msra.mxu0 0.0
  %531 = vmatpush.msra.mxu0 0.0
  %532 = vmatpush.msra.mxu0 0.0
  %533 = vmatpush.msra.mxu0 0.0
  %534 = vmatpush.msra.mxu0 0.0
  %535 = vmatpush.msra.mxu0 0.0
  %536 = vmatpush.msra.mxu0 %v514
  %537 = vmatpush.msra.mxu0 %v513
  %538 = vmatmul.f32.gmra.mxu0 %v520
  %v539 = vpop.f32.mrf.mxu0
  %v540 = vadd.f32 %v517, %v539
  %541 = vdwg.mxu0
  %v542 = vld [vmem:[%s10] sm:$0xf]
  %v544 = vsel %vm98, %v542, 0
  %546 = vmatpush.msra.mxu0 0.0
  %547 = vmatpush.msra.mxu0 0.0
  %548 = vmatpush.msra.mxu0 0.0
  %549 = vmatpush.msra.mxu0 0.0
  %550 = vmatpush.msra.mxu0 0.0
  %551 = vmatpush.msra.mxu0 0.0
  %552 = vmatpush.msra.mxu0 0.0
  %553 = vmatpush.msra.mxu0 0.0
  %554 = vmatpush.msra.mxu0 0.0
  %555 = vmatpush.msra.mxu0 0.0
  %556 = vmatpush.msra.mxu0 0.0
  %557 = vmatpush.msra.mxu0 0.0
  %558 = vmatpush.msra.mxu0 0.0
  %559 = vmatpush.msra.mxu0 0.0
  %560 = vmatpush.msra.mxu0 0.0
  %561 = vmatpush.msra.mxu0 %v544
  %562 = vmatmul.f32.gmra.mxu0 %v93
  %v563 = vpop.f32.mrf.mxu0
  %v564 = vadd.f32 0.0, %v563
  %565 = vmatmul.f32.gmra.mxu0 %v96
  %v566 = vpop.f32.mrf.mxu0
  %v567 = vadd.f32 0.0, %v566
  %568 = vdwg.mxu0
  %569 = vmatpush.msra.mxu0 0.0
  %570 = vmatpush.msra.mxu0 0.0
  %571 = vmatpush.msra.mxu0 0.0
  %572 = vmatpush.msra.mxu0 0.0
  %573 = vmatpush.msra.mxu0 0.0
  %574 = vmatpush.msra.mxu0 0.0
  %575 = vmatpush.msra.mxu0 0.0
  %576 = vmatpush.msra.mxu0 0.0
  %577 = vmatpush.msra.mxu0 0.0
  %578 = vmatpush.msra.mxu0 0.0
  %579 = vmatpush.msra.mxu0 0.0
  %580 = vmatpush.msra.mxu0 0.0
  %581 = vmatpush.msra.mxu0 0.0
  %582 = vmatpush.msra.mxu0 0.0
  %583 = vmatpush.msra.mxu0 0.0
  %584 = vmatpush.msra.mxu0 %v540
  %585 = vmatmul.f32.gmra.mxu0 %v127
  %v586 = vpop.f32.mrf.mxu0
  %v587 = vadd.f32 0.0, %v586
  %588 = vmatmul.f32.gmra.mxu0 %v130
  %v589 = vpop.f32.mrf.mxu0
  %v590 = vadd.f32 0.0, %v589
  %591 = vdwg.mxu0
  %593 = vrot.lane.b32.xlu0 %v540, 112
  %v594 = vpop.permute.xlu0 %593
  %596 = vmatpush.msra.mxu0 0.0
  %597 = vmatpush.msra.mxu0 0.0
  %598 = vmatpush.msra.mxu0 0.0
  %599 = vmatpush.msra.mxu0 0.0
  %600 = vmatpush.msra.mxu0 0.0
  %601 = vmatpush.msra.mxu0 0.0
  %602 = vmatpush.msra.mxu0 0.0
  %603 = vmatpush.msra.mxu0 0.0
  %604 = vmatpush.msra.mxu0 0.0
  %605 = vmatpush.msra.mxu0 0.0
  %606 = vmatpush.msra.mxu0 0.0
  %607 = vmatpush.msra.mxu0 0.0
  %608 = vmatpush.msra.mxu0 0.0
  %609 = vmatpush.msra.mxu0 0.0
  %610 = vmatpush.msra.mxu0 0.0
  %611 = vmatpush.msra.mxu0 %v594
  %612 = vmatmul.f32.gmra.mxu0 %v160
  %v613 = vpop.f32.mrf.mxu0
  %v614 = vadd.f32 %v564, %v613
  %615 = vmatmul.f32.gmra.mxu0 %v163
  %v616 = vpop.f32.mrf.mxu0
  %v617 = vadd.f32 %v567, %v616
  %618 = vdwg.mxu0
  %v619 = vmul.f32 %v587, %v614
  %v620 = vmul.f32 %v590, %v617
  %v621 = vsel %vm125, %v619, 0.0
  %622 = vadd.xlane.f32.xlu0 %v621
  %v623 = vpop.xlane.xlu0 %622
  %v624 = vsel %vm125, %v620, 0.0
  %625 = vadd.xlane.f32.xlu0 %v624
  %v626 = vpop.xlane.xlu0 %625
  %629 = vrot.lane.b32.xlu0 %v619, 120
  %v630 = vpop.permute.xlu0 %629
  %631 = vrot.lane.b32.xlu0 %v620, 120
  %v632 = vpop.permute.xlu0 %631
  %v635 = vsel %vm125, %v630, 0.0
  %636 = vadd.xlane.f32.xlu0 %v635
  %v637 = vpop.xlane.xlu0 %636
  %v638 = vsel %vm125, %v632, 0.0
  %639 = vadd.xlane.f32.xlu0 %v638
  %v640 = vpop.xlane.xlu0 %639
  %v641 = vsel %vm210, %v623, %v637
  %v642 = vsel %vm210, %v626, %v640
  %644 = vset.pattern.permute.xlu0 0
  %645 = vperm.xlu0 %644, %v641
  %v646 = vpop.permute.xlu0 %645
  %649 = vset.pattern.permute.xlu0 0
  %650 = vperm.xlu0 %649, %v642
  %v651 = vpop.permute.xlu0 %650
  %v653 = vsel %vm213, %v646, -1e+30
  %v654 = vsel %vm214, %v651, -1e+30
  %v655 = vsel %vm125, %v653, -inf
  %v656 = vsel %vm125, %v654, -inf
  %v657 = vmax.f32 %v655, %v656
  %v658 = vrot.slane %v657, 4
  %v659 = vmax.f32 %v657, %v658
  %v660 = vrot.slane %v659, 2
  %v661 = vmax.f32 %v659, %v660
  %v662 = vrot.slane %v661, 1
  %v663 = vmax.f32 %v661, %v662
  %v664 = vsel %vm213, %v663, -1e+30
  %v665 = vsel %vm214, %v663, -1e+30
  %v666 = vsel %vm125, %v664, -inf
  %667 = vmax.xlane.f32.xlu0 %v666
  %v668 = vpop.xlane.xlu0 %667
  %v669 = vsel %vm125, %v665, -inf
  %670 = vmax.xlane.f32.xlu0 %v669
  %v671 = vpop.xlane.xlu0 %670
  %v672 = vsub.f32 %v641, %v668
  %v673 = vsub.f32 %v642, %v671
  %v674 = vmul.f32 %v672, 1.442695
  %v675 = vpow.pop %v674
  %v676 = vmul.f32 %v673, 1.442695
  %v677 = vpow.pop %v676
  %679 = vset.pattern.permute.xlu0 0
  %680 = vperm.xlu0 %679, %v675
  %v681 = vpop.permute.xlu0 %680
  %684 = vset.pattern.permute.xlu0 0
  %685 = vperm.xlu0 %684, %v677
  %v686 = vpop.permute.xlu0 %685
  %v688 = vsel %vm213, %v681, 0.0
  %v689 = vsel %vm214, %v686, 0.0
  %v690 = vsel %vm125, %v688, 0.0
  %v691 = vsel %vm125, %v689, 0.0
  %v692 = vadd.f32 %v690, %v691
  %v693 = vrot.slane %v692, 4
  %v694 = vadd.f32 %v692, %v693
  %v695 = vrot.slane %v694, 2
  %v696 = vadd.f32 %v694, %v695
  %v697 = vrot.slane %v696, 1
  %v698 = vadd.f32 %v696, %v697
  %v699 = vsel %vm213, %v698, 0.0
  %v700 = vsel %vm214, %v698, 0.0
  %v701 = vsel %vm125, %v699, 0.0
  %702 = vadd.xlane.f32.xlu0 %v701
  %v703 = vpop.xlane.xlu0 %702
  %v704 = vsel %vm125, %v700, 0.0
  %705 = vadd.xlane.f32.xlu0 %v704
  %v706 = vpop.xlane.xlu0 %705
  %v707 = vrcp.pop %v703
  %v708 = vmul.f32 %v703, %v707
  %v709 = vsub.f32 1.0, %v708
  %v710 = vmul.f32 %v707, %v709
  %v711 = vadd.f32 %v707, %v710
  %vm712 = vweird.f32 %v703
  %vm713 = vweird.f32 %v707
  %vm714 = vmor %vm712, %vm713
  %v715 = vsel %vm714, %v707, %v711
  %v716 = vand.u32 2147483647, %v703
  %vm717 = vcmp.eq.f32.partialorder %v716, 8.507059e+37
  %v718 = vand.u32 %v703, 2147483648
  %v719 = vor.u32 1.1754944e-38, %v718
  %v720 = vsel %vm717, %v719, %v715
  %v721 = vmul.f32 %v675, %v720
  %v722 = vrcp.pop %v706
  %v723 = vmul.f32 %v706, %v722
  %v724 = vsub.f32 1.0, %v723
  %v725 = vmul.f32 %v722, %v724
  %v726 = vadd.f32 %v722, %v725
  %vm727 = vweird.f32 %v706
  %vm728 = vweird.f32 %v722
  %vm729 = vmor %vm727, %vm728
  %v730 = vsel %vm729, %v722, %v726
  %v731 = vand.u32 2147483647, %v706
  %vm732 = vcmp.eq.f32.partialorder %v731, 8.507059e+37
  %v733 = vand.u32 %v706, 2147483648
  %v734 = vor.u32 1.1754944e-38, %v733
  %v735 = vsel %vm732, %v734, %v730
  %v736 = vmul.f32 %v677, %v735
  %737 = vset.pattern.permute.xlu0 1
  %738 = vperm.xlu0 %737, %v641
  %v739 = vpop.permute.xlu0 %738
  %741 = vset.pattern.permute.xlu0 1
  %742 = vperm.xlu0 %741, %v642
  %v743 = vpop.permute.xlu0 %742
  %v745 = vsel %vm213, %v739, -1e+30
  %v746 = vsel %vm214, %v743, -1e+30
  %v747 = vsel %vm125, %v745, -inf
  %v748 = vsel %vm125, %v746, -inf
  %v749 = vmax.f32 %v747, %v748
  %v750 = vrot.slane %v749, 4
  %v751 = vmax.f32 %v749, %v750
  %v752 = vrot.slane %v751, 2
  %v753 = vmax.f32 %v751, %v752
  %v754 = vrot.slane %v753, 1
  %v755 = vmax.f32 %v753, %v754
  %v756 = vsel %vm213, %v755, -1e+30
  %v757 = vsel %vm214, %v755, -1e+30
  %v758 = vsel %vm125, %v756, -inf
  %759 = vmax.xlane.f32.xlu0 %v758
  %v760 = vpop.xlane.xlu0 %759
  %v761 = vsel %vm125, %v757, -inf
  %762 = vmax.xlane.f32.xlu0 %v761
  %v763 = vpop.xlane.xlu0 %762
  %v764 = vsub.f32 %v641, %v760
  %v765 = vsub.f32 %v642, %v763
  %v766 = vmul.f32 %v764, 1.442695
  %v767 = vpow.pop %v766
  %v768 = vmul.f32 %v765, 1.442695
  %v769 = vpow.pop %v768
  %771 = vset.pattern.permute.xlu0 1
  %772 = vperm.xlu0 %771, %v767
  %v773 = vpop.permute.xlu0 %772
  %776 = vset.pattern.permute.xlu0 1
  %777 = vperm.xlu0 %776, %v769
  %v778 = vpop.permute.xlu0 %777
  %v780 = vsel %vm213, %v773, 0.0
  %v781 = vsel %vm214, %v778, 0.0
  %v782 = vsel %vm125, %v780, 0.0
  %v783 = vsel %vm125, %v781, 0.0
  %v784 = vadd.f32 %v782, %v783
  %v785 = vrot.slane %v784, 4
  %v786 = vadd.f32 %v784, %v785
  %v787 = vrot.slane %v786, 2
  %v788 = vadd.f32 %v786, %v787
  %v789 = vrot.slane %v788, 1
  %v790 = vadd.f32 %v788, %v789
  %v791 = vsel %vm213, %v790, 0.0
  %v792 = vsel %vm214, %v790, 0.0
  %v793 = vsel %vm125, %v791, 0.0
  %794 = vadd.xlane.f32.xlu0 %v793
  %v795 = vpop.xlane.xlu0 %794
  %v796 = vsel %vm125, %v792, 0.0
  %797 = vadd.xlane.f32.xlu0 %v796
  %v798 = vpop.xlane.xlu0 %797
  %v799 = vrcp.pop %v795
  %v800 = vmul.f32 %v795, %v799
  %v801 = vsub.f32 1.0, %v800
  %v802 = vmul.f32 %v799, %v801
  %v803 = vadd.f32 %v799, %v802
  %vm804 = vweird.f32 %v795
  %vm805 = vweird.f32 %v799
  %vm806 = vmor %vm804, %vm805
  %v807 = vsel %vm806, %v799, %v803
  %v808 = vand.u32 2147483647, %v795
  %vm809 = vcmp.eq.f32.partialorder %v808, 8.507059e+37
  %v810 = vand.u32 %v795, 2147483648
  %v811 = vor.u32 1.1754944e-38, %v810
  %v812 = vsel %vm809, %v811, %v807
  %v813 = vmul.f32 %v767, %v812
  %v814 = vrcp.pop %v798
  %v815 = vmul.f32 %v798, %v814
  %v816 = vsub.f32 1.0, %v815
  %v817 = vmul.f32 %v814, %v816
  %v818 = vadd.f32 %v814, %v817
  %vm819 = vweird.f32 %v798
  %vm820 = vweird.f32 %v814
  %vm821 = vmor %vm819, %vm820
  %v822 = vsel %vm821, %v814, %v818
  %v823 = vand.u32 2147483647, %v798
  %vm824 = vcmp.eq.f32.partialorder %v823, 8.507059e+37
  %v825 = vand.u32 %v798, 2147483648
  %v826 = vor.u32 1.1754944e-38, %v825
  %v827 = vsel %vm824, %v826, %v822
  %v828 = vmul.f32 %v769, %v827
  %v829 = vsel %vm210, %v721, %v813
  %v830 = vsel %vm210, %v736, %v828
  %831 = vrot.lane.b32.xlu0 %v540, 96
  %v832 = vpop.permute.xlu0 %831
  %834 = vmatpush.msra.mxu0 0.0
  %835 = vmatpush.msra.mxu0 0.0
  %836 = vmatpush.msra.mxu0 0.0
  %837 = vmatpush.msra.mxu0 0.0
  %838 = vmatpush.msra.mxu0 0.0
  %839 = vmatpush.msra.mxu0 0.0
  %840 = vmatpush.msra.mxu0 0.0
  %841 = vmatpush.msra.mxu0 0.0
  %842 = vmatpush.msra.mxu0 0.0
  %843 = vmatpush.msra.mxu0 0.0
  %844 = vmatpush.msra.mxu0 0.0
  %845 = vmatpush.msra.mxu0 0.0
  %846 = vmatpush.msra.mxu0 0.0
  %847 = vmatpush.msra.mxu0 0.0
  %848 = vmatpush.msra.mxu0 0.0
  %849 = vmatpush.msra.mxu0 %v832
  %850 = vmatmul.f32.gmra.mxu0 %v160
  %v851 = vpop.f32.mrf.mxu0
  %v852 = vadd.f32 %v564, %v851
  %853 = vmatmul.f32.gmra.mxu0 %v163
  %v854 = vpop.f32.mrf.mxu0
  %v855 = vadd.f32 %v567, %v854
  %856 = vdwg.mxu0
  %858 = vset.pattern.permute.xlu0 0
  %859 = vperm.xlu0 %858, %v829
  %v860 = vpop.permute.xlu0 %859
  %863 = vset.pattern.permute.xlu0 0
  %864 = vperm.xlu0 %863, %v830
  %v865 = vpop.permute.xlu0 %864
  %v867 = vmul.f32 %v852, %v860
  %v868 = vmul.f32 %v855, %v865
  %869 = vset.pattern.permute.xlu0 1
  %870 = vperm.xlu0 %869, %v829
  %v871 = vpop.permute.xlu0 %870
  %873 = vset.pattern.permute.xlu0 1
  %874 = vperm.xlu0 %873, %v830
  %v875 = vpop.permute.xlu0 %874
  %v877 = vmul.f32 %v852, %v871
  %v878 = vmul.f32 %v855, %v875
  %v879 = vsel %vm125, %v867, %v877
  %v880 = vsel %vm125, %v868, %v878
  %v881 = vld [vmem:[%s11] sm:$0xff]
  %v882 = vld [vmem:[%s11 + $0x8] sm:$0xff]
  %v883 = vld [vmem:[%s12] sm:$0x1]
  %v885 = vperm.slane %v883, 0
  %v888 = vsel %vm488, %v879, 0
  %v891 = vsel %vm488, %v880, 0
  %893 = vmatpush.msra.mxu0 0.0
  %894 = vmatpush.msra.mxu0 0.0
  %895 = vmatpush.msra.mxu0 0.0
  %896 = vmatpush.msra.mxu0 0.0
  %897 = vmatpush.msra.mxu0 0.0
  %898 = vmatpush.msra.mxu0 0.0
  %899 = vmatpush.msra.mxu0 0.0
  %900 = vmatpush.msra.mxu0 0.0
  %901 = vmatpush.msra.mxu0 0.0
  %902 = vmatpush.msra.mxu0 0.0
  %903 = vmatpush.msra.mxu0 0.0
  %904 = vmatpush.msra.mxu0 0.0
  %905 = vmatpush.msra.mxu0 0.0
  %906 = vmatpush.msra.mxu0 0.0
  %907 = vmatpush.msra.mxu0 %v882
  %908 = vmatpush.msra.mxu0 %v881
  %909 = vmatmul.f32.gmra.mxu0 %v888
  %v910 = vpop.f32.mrf.mxu0
  %v911 = vadd.f32 %v885, %v910
  %912 = vmatmul.f32.gmra.mxu0 %v891
  %v913 = vpop.f32.mrf.mxu0
  %v914 = vadd.f32 %v885, %v913
  %915 = vdwg.mxu0
  %v916 = vmax.f32 %v911, 0.0
  %v917 = vmax.f32 %v914, 0.0
  %v918 = vld [vmem:[%s13] sm:$0xff]
  %v919 = vld [vmem:[%s13 + $0x8] sm:$0xff]
  %v920 = vld [vmem:[%s13 + $0x10] sm:$0xff]
  %v921 = vld [vmem:[%s14] sm:$0x1]
  %v923 = vperm.slane %v921, 0
  %vm925 = vcmask 195584
  %v927 = vsel %vm925, %v916, 0
  %v930 = vsel %vm925, %v917, 0
  %932 = vmatpush.msra.mxu0 0.0
  %933 = vmatpush.msra.mxu0 0.0
  %934 = vmatpush.msra.mxu0 0.0
  %935 = vmatpush.msra.mxu0 0.0
  %936 = vmatpush.msra.mxu0 0.0
  %937 = vmatpush.msra.mxu0 0.0
  %938 = vmatpush.msra.mxu0 0.0
  %939 = vmatpush.msra.mxu0 0.0
  %940 = vmatpush.msra.mxu0 0.0
  %941 = vmatpush.msra.mxu0 0.0
  %942 = vmatpush.msra.mxu0 0.0
  %943 = vmatpush.msra.mxu0 0.0
  %944 = vmatpush.msra.mxu0 0.0
  %945 = vmatpush.msra.mxu0 %v920
  %946 = vmatpush.msra.mxu0 %v919
  %947 = vmatpush.msra.mxu0 %v918
  %948 = vmatmul.f32.gmra.mxu0 %v927
  %v949 = vpop.f32.mrf.mxu0
  %v950 = vadd.f32 %v923, %v949
  %951 = vmatmul.f32.gmra.mxu0 %v930
  %v952 = vpop.f32.mrf.mxu0
  %v953 = vadd.f32 %v923, %v952
  %954 = vdwg.mxu0
  %vm955 = vcmp.ge.f32.partialorder %v950, 0.0
  %vm956 = vcmp.ge.f32.partialorder %v953, 0.0
  %v957 = vmul.f32 %v950, 0.01
  %v958 = vmul.f32 %v953, 0.01
  %v959 = vsel %vm955, %v950, %v957
  %v960 = vsel %vm956, %v953, %v958
  %v961 = vld [vmem:[%s4] sm:$0xff]
  %v962 = vld [vmem:[%s4 + $0x8] sm:$0xff]
  %v963 = vadd.f32 %v959, %v961
  %v964 = vadd.f32 %v960, %v962
  %vm965 = vcmp.gt.f32.partialorder %v50, 0.5
  %vm966 = vcmp.gt.f32.partialorder %v51, 0.5
  %968 = vset.pattern.permute.xlu0 0
  %969 = vperm.xlu0 %968, %v963
  %v970 = vpop.permute.xlu0 %969
  %973 = vset.pattern.permute.xlu0 0
  %974 = vperm.xlu0 %973, %v964
  %v975 = vpop.permute.xlu0 %974
  %v977 = vsel %vm965, %v970, -1e+30
  %v978 = vsel %vm966, %v975, -1e+30
  %v979 = vsel %vm125, %v977, -inf
  %v980 = vsel %vm125, %v978, -inf
  %v981 = vmax.f32 %v979, %v980
  %v982 = vrot.slane %v981, 4
  %v983 = vmax.f32 %v981, %v982
  %v984 = vrot.slane %v983, 2
  %v985 = vmax.f32 %v983, %v984
  %v986 = vrot.slane %v985, 1
  %v987 = vmax.f32 %v985, %v986
  %v988 = vsel %vm965, %v987, -1e+30
  %v989 = vsel %vm966, %v987, -1e+30
  %v990 = vsel %vm125, %v988, -inf
  %991 = vmax.xlane.f32.xlu0 %v990
  %v992 = vpop.xlane.xlu0 %991
  %v993 = vsel %vm125, %v989, -inf
  %994 = vmax.xlane.f32.xlu0 %v993
  %v995 = vpop.xlane.xlu0 %994
  %v996 = vsub.f32 %v963, %v992
  %v997 = vsub.f32 %v964, %v995
  %v998 = vmul.f32 %v996, 1.442695
  %v999 = vpow.pop %v998
  %v1000 = vmul.f32 %v997, 1.442695
  %v1001 = vpow.pop %v1000
  %1003 = vset.pattern.permute.xlu0 0
  %1004 = vperm.xlu0 %1003, %v999
  %v1005 = vpop.permute.xlu0 %1004
  %1008 = vset.pattern.permute.xlu0 0
  %1009 = vperm.xlu0 %1008, %v1001
  %v1010 = vpop.permute.xlu0 %1009
  %v1012 = vsel %vm965, %v1005, 0.0
  %v1013 = vsel %vm966, %v1010, 0.0
  %v1014 = vsel %vm125, %v1012, 0.0
  %v1015 = vsel %vm125, %v1013, 0.0
  %v1016 = vadd.f32 %v1014, %v1015
  %v1017 = vrot.slane %v1016, 4
  %v1018 = vadd.f32 %v1016, %v1017
  %v1019 = vrot.slane %v1018, 2
  %v1020 = vadd.f32 %v1018, %v1019
  %v1021 = vrot.slane %v1020, 1
  %v1022 = vadd.f32 %v1020, %v1021
  %v1023 = vsel %vm965, %v1022, 0.0
  %v1024 = vsel %vm966, %v1022, 0.0
  %v1025 = vsel %vm125, %v1023, 0.0
  %1026 = vadd.xlane.f32.xlu0 %v1025
  %v1027 = vpop.xlane.xlu0 %1026
  %v1028 = vsel %vm125, %v1024, 0.0
  %1029 = vadd.xlane.f32.xlu0 %v1028
  %v1030 = vpop.xlane.xlu0 %1029
  %v1031 = vrcp.pop %v1027
  %v1032 = vmul.f32 %v1027, %v1031
  %v1033 = vsub.f32 1.0, %v1032
  %v1034 = vmul.f32 %v1031, %v1033
  %v1035 = vadd.f32 %v1031, %v1034
  %vm1036 = vweird.f32 %v1027
  %vm1037 = vweird.f32 %v1031
  %vm1038 = vmor %vm1036, %vm1037
  %v1039 = vsel %vm1038, %v1031, %v1035
  %v1040 = vand.u32 2147483647, %v1027
  %vm1041 = vcmp.eq.f32.partialorder %v1040, 8.507059e+37
  %v1042 = vand.u32 %v1027, 2147483648
  %v1043 = vor.u32 1.1754944e-38, %v1042
  %v1044 = vsel %vm1041, %v1043, %v1039
  %v1045 = vmul.f32 %v999, %v1044
  %v1046 = vrcp.pop %v1030
  %v1047 = vmul.f32 %v1030, %v1046
  %v1048 = vsub.f32 1.0, %v1047
  %v1049 = vmul.f32 %v1046, %v1048
  %v1050 = vadd.f32 %v1046, %v1049
  %vm1051 = vweird.f32 %v1030
  %vm1052 = vweird.f32 %v1046
  %vm1053 = vmor %vm1051, %vm1052
  %v1054 = vsel %vm1053, %v1046, %v1050
  %v1055 = vand.u32 2147483647, %v1030
  %vm1056 = vcmp.eq.f32.partialorder %v1055, 8.507059e+37
  %v1057 = vand.u32 %v1030, 2147483648
  %v1058 = vor.u32 1.1754944e-38, %v1057
  %v1059 = vsel %vm1056, %v1058, %v1054
  %v1060 = vmul.f32 %v1001, %v1059
  %1061 = vset.pattern.permute.xlu0 1
  %1062 = vperm.xlu0 %1061, %v963
  %v1063 = vpop.permute.xlu0 %1062
  %1065 = vset.pattern.permute.xlu0 1
  %1066 = vperm.xlu0 %1065, %v964
  %v1067 = vpop.permute.xlu0 %1066
  %v1069 = vsel %vm965, %v1063, -1e+30
  %v1070 = vsel %vm966, %v1067, -1e+30
  %v1071 = vsel %vm125, %v1069, -inf
  %v1072 = vsel %vm125, %v1070, -inf
  %v1073 = vmax.f32 %v1071, %v1072
  %v1074 = vrot.slane %v1073, 4
  %v1075 = vmax.f32 %v1073, %v1074
  %v1076 = vrot.slane %v1075, 2
  %v1077 = vmax.f32 %v1075, %v1076
  %v1078 = vrot.slane %v1077, 1
  %v1079 = vmax.f32 %v1077, %v1078
  %v1080 = vsel %vm965, %v1079, -1e+30
  %v1081 = vsel %vm966, %v1079, -1e+30
  %v1082 = vsel %vm125, %v1080, -inf
  %1083 = vmax.xlane.f32.xlu0 %v1082
  %v1084 = vpop.xlane.xlu0 %1083
  %v1085 = vsel %vm125, %v1081, -inf
  %1086 = vmax.xlane.f32.xlu0 %v1085
  %v1087 = vpop.xlane.xlu0 %1086
  %v1088 = vsub.f32 %v963, %v1084
  %v1089 = vsub.f32 %v964, %v1087
  %v1090 = vmul.f32 %v1088, 1.442695
  %v1091 = vpow.pop %v1090
  %v1092 = vmul.f32 %v1089, 1.442695
  %v1093 = vpow.pop %v1092
  %1095 = vset.pattern.permute.xlu0 1
  %1096 = vperm.xlu0 %1095, %v1091
  %v1097 = vpop.permute.xlu0 %1096
  %1100 = vset.pattern.permute.xlu0 1
  %1101 = vperm.xlu0 %1100, %v1093
  %v1102 = vpop.permute.xlu0 %1101
  %v1104 = vsel %vm965, %v1097, 0.0
  %v1105 = vsel %vm966, %v1102, 0.0
  %v1106 = vsel %vm125, %v1104, 0.0
  %v1107 = vsel %vm125, %v1105, 0.0
  %v1108 = vadd.f32 %v1106, %v1107
  %v1109 = vrot.slane %v1108, 4
  %v1110 = vadd.f32 %v1108, %v1109
  %v1111 = vrot.slane %v1110, 2
  %v1112 = vadd.f32 %v1110, %v1111
  %v1113 = vrot.slane %v1112, 1
  %v1114 = vadd.f32 %v1112, %v1113
  %v1115 = vsel %vm965, %v1114, 0.0
  %v1116 = vsel %vm966, %v1114, 0.0
  %v1117 = vsel %vm125, %v1115, 0.0
  %1118 = vadd.xlane.f32.xlu0 %v1117
  %v1119 = vpop.xlane.xlu0 %1118
  %v1120 = vsel %vm125, %v1116, 0.0
  %1121 = vadd.xlane.f32.xlu0 %v1120
  %v1122 = vpop.xlane.xlu0 %1121
  %v1123 = vrcp.pop %v1119
  %v1124 = vmul.f32 %v1119, %v1123
  %v1125 = vsub.f32 1.0, %v1124
  %v1126 = vmul.f32 %v1123, %v1125
  %v1127 = vadd.f32 %v1123, %v1126
  %vm1128 = vweird.f32 %v1119
  %vm1129 = vweird.f32 %v1123
  %vm1130 = vmor %vm1128, %vm1129
  %v1131 = vsel %vm1130, %v1123, %v1127
  %v1132 = vand.u32 2147483647, %v1119
  %vm1133 = vcmp.eq.f32.partialorder %v1132, 8.507059e+37
  %v1134 = vand.u32 %v1119, 2147483648
  %v1135 = vor.u32 1.1754944e-38, %v1134
  %v1136 = vsel %vm1133, %v1135, %v1131
  %v1137 = vmul.f32 %v1091, %v1136
  %v1138 = vrcp.pop %v1122
  %v1139 = vmul.f32 %v1122, %v1138
  %v1140 = vsub.f32 1.0, %v1139
  %v1141 = vmul.f32 %v1138, %v1140
  %v1142 = vadd.f32 %v1138, %v1141
  %vm1143 = vweird.f32 %v1122
  %vm1144 = vweird.f32 %v1138
  %vm1145 = vmor %vm1143, %vm1144
  %v1146 = vsel %vm1145, %v1138, %v1142
  %v1147 = vand.u32 2147483647, %v1122
  %vm1148 = vcmp.eq.f32.partialorder %v1147, 8.507059e+37
  %v1149 = vand.u32 %v1122, 2147483648
  %v1150 = vor.u32 1.1754944e-38, %v1149
  %v1151 = vsel %vm1148, %v1150, %v1146
  %v1152 = vmul.f32 %v1093, %v1151
  %v1153 = vsel %vm210, %v1045, %v1137
  %v1154 = vsel %vm210, %v1060, %v1152
  %1155 = vset.pattern.permute.xlu0 2
  %1156 = vperm.xlu0 %1155, %v963
  %v1157 = vpop.permute.xlu0 %1156
  %1159 = vset.pattern.permute.xlu0 2
  %1160 = vperm.xlu0 %1159, %v964
  %v1161 = vpop.permute.xlu0 %1160
  %v1163 = vsel %vm213, %v1157, -1e+30
  %v1164 = vsel %vm214, %v1161, -1e+30
  %v1165 = vsel %vm125, %v1163, -inf
  %v1166 = vsel %vm125, %v1164, -inf
  %v1167 = vmax.f32 %v1165, %v1166
  %v1168 = vrot.slane %v1167, 4
  %v1169 = vmax.f32 %v1167, %v1168
  %v1170 = vrot.slane %v1169, 2
  %v1171 = vmax.f32 %v1169, %v1170
  %v1172 = vrot.slane %v1171, 1
  %v1173 = vmax.f32 %v1171, %v1172
  %v1174 = vsel %vm213, %v1173, -1e+30
  %v1175 = vsel %vm214, %v1173, -1e+30
  %v1176 = vsel %vm125, %v1174, -inf
  %1177 = vmax.xlane.f32.xlu0 %v1176
  %v1178 = vpop.xlane.xlu0 %1177
  %v1179 = vsel %vm125, %v1175, -inf
  %1180 = vmax.xlane.f32.xlu0 %v1179
  %v1181 = vpop.xlane.xlu0 %1180
  %v1182 = vsub.f32 %v963, %v1178
  %v1183 = vsub.f32 %v964, %v1181
  %v1184 = vmul.f32 %v1182, 1.442695
  %v1185 = vpow.pop %v1184
  %v1186 = vmul.f32 %v1183, 1.442695
  %v1187 = vpow.pop %v1186
  %1189 = vset.pattern.permute.xlu0 2
  %1190 = vperm.xlu0 %1189, %v1185
  %v1191 = vpop.permute.xlu0 %1190
  %1194 = vset.pattern.permute.xlu0 2
  %1195 = vperm.xlu0 %1194, %v1187
  %v1196 = vpop.permute.xlu0 %1195
  %v1198 = vsel %vm213, %v1191, 0.0
  %v1199 = vsel %vm214, %v1196, 0.0
  %v1200 = vsel %vm125, %v1198, 0.0
  %v1201 = vsel %vm125, %v1199, 0.0
  %v1202 = vadd.f32 %v1200, %v1201
  %v1203 = vrot.slane %v1202, 4
  %v1204 = vadd.f32 %v1202, %v1203
  %v1205 = vrot.slane %v1204, 2
  %v1206 = vadd.f32 %v1204, %v1205
  %v1207 = vrot.slane %v1206, 1
  %v1208 = vadd.f32 %v1206, %v1207
  %v1209 = vsel %vm213, %v1208, 0.0
  %v1210 = vsel %vm214, %v1208, 0.0
  %v1211 = vsel %vm125, %v1209, 0.0
  %1212 = vadd.xlane.f32.xlu0 %v1211
  %v1213 = vpop.xlane.xlu0 %1212
  %v1214 = vsel %vm125, %v1210, 0.0
  %1215 = vadd.xlane.f32.xlu0 %v1214
  %v1216 = vpop.xlane.xlu0 %1215
  %v1217 = vrcp.pop %v1213
  %v1218 = vmul.f32 %v1213, %v1217
  %v1219 = vsub.f32 1.0, %v1218
  %v1220 = vmul.f32 %v1217, %v1219
  %v1221 = vadd.f32 %v1217, %v1220
  %vm1222 = vweird.f32 %v1213
  %vm1223 = vweird.f32 %v1217
  %vm1224 = vmor %vm1222, %vm1223
  %v1225 = vsel %vm1224, %v1217, %v1221
  %v1226 = vand.u32 2147483647, %v1213
  %vm1227 = vcmp.eq.f32.partialorder %v1226, 8.507059e+37
  %v1228 = vand.u32 %v1213, 2147483648
  %v1229 = vor.u32 1.1754944e-38, %v1228
  %v1230 = vsel %vm1227, %v1229, %v1225
  %v1231 = vmul.f32 %v1185, %v1230
  %v1232 = vrcp.pop %v1216
  %v1233 = vmul.f32 %v1216, %v1232
  %v1234 = vsub.f32 1.0, %v1233
  %v1235 = vmul.f32 %v1232, %v1234
  %v1236 = vadd.f32 %v1232, %v1235
  %vm1237 = vweird.f32 %v1216
  %vm1238 = vweird.f32 %v1232
  %vm1239 = vmor %vm1237, %vm1238
  %v1240 = vsel %vm1239, %v1232, %v1236
  %v1241 = vand.u32 2147483647, %v1216
  %vm1242 = vcmp.eq.f32.partialorder %v1241, 8.507059e+37
  %v1243 = vand.u32 %v1216, 2147483648
  %v1244 = vor.u32 1.1754944e-38, %v1243
  %v1245 = vsel %vm1242, %v1244, %v1240
  %v1246 = vmul.f32 %v1187, %v1245
  %vm1247 = vcmask 15360
  %v1248 = vsel %vm1247, %v1153, %v1231
  %v1249 = vsel %vm1247, %v1154, %v1246
  %vm1250 = vcmask 23552
  %1251 = vst.msk [vmem:[%s15] sm:$0xff] %vm1250, %v1248
  %1252 = vst.msk [vmem:[%s15 + $0x8] sm:$0xff] %vm1250, %v1249
  // Predicated region
  $region62: #{transformer_net.1} parent=0 // pred_check
    _
  $region63: #{transformer_net.1} parent=0 // pred_check_branch
    %1254 = sbr.rel (0) target = $region65
  $region64: #{transformer_net.1} parent=0 // pred_region
    _
  $region65: #{transformer_net.1} parent=0 // pred_fallthru
    _
  // Predicated region
  $region66: #{transformer_net.1} parent=0 // pred_check
    _
  $region67: #{transformer_net.1} parent=0 // pred_check_branch
    %1256 = sbr.rel (0) target = $region69
  $region68: #{transformer_net.1} parent=0 // pred_region
    _
  $region69: #{transformer_net.1} parent=0 // pred_fallthru
    _

</llo_original>
